<compile_context>
chip_gen: v7x
topology: tpu7x:2x2x1
jax: 0.10.0
libtpu: 0.0.40
codegen_flags: <defaults>
</compile_context>

<pallas_src>
import jax
import jax.numpy as jnp
from jax.experimental import pallas as pl
from jax.experimental.pallas import tpu as pltpu

# ---------------- configuration (matches module defaults) -------------------
B = 2                  # batch
SEQ = 10               # seq_len
SHAPE = 10             # per-step feature size  -> 10*10 = 100 flattened
IN_FLAT = SEQ * SHAPE  # 100
EMBED_DIM = 50
CLASS_SIZE = 5
D_MODEL = 256
OUTPUT_DIM = 3
NUM_RES = 7

B_PAD = 8              # pad batch rows to the fp32 sublane tile
K_PAD = 128            # padded fused-projection contraction dim (100 + 5 + 1 -> 128)
OUT_PAD = 128          # lane-dense padded output width
K_REAL = IN_FLAT + CLASS_SIZE + 1   # 106 real columns (x | onehot | ones-for-bias)


# ---------------- Pallas kernel ----------------------------------------------
def mlp_resnet_kernel(xin_ref, wproj_ref, wres_hbm, bres_ref, wout_ref, bout_ref,
                      o_ref, wres_buf, sem):
    # Prime the DMA for residual layer 0 so it overlaps with the projection matmul.
    pltpu.make_async_copy(wres_hbm.at[0], wres_buf.at[0], sem.at[0]).start()

    # Fused projection: one bf16 matmul.  The bias is folded into the weight via the
    # ones column, and the embedding table is folded in at pack time (no gather/concat).
    h = jnp.dot(xin_ref[...].astype(jnp.bfloat16), wproj_ref[...],
                preferred_element_type=jnp.float32)
    h = jnp.maximum(h, 0.0)

    # 7 residual blocks, statically unrolled, manual double-buffered weight DMA:
    #   wait(layer i) -> prefetch(layer i+1) -> compute(layer i)
    # TODO(synk): nn.Dropout(p=0.05) is identity in inference mode; training-mode
    #             RNG masking is not wired in.
    for i in range(NUM_RES):
        slot = i & 1
        pltpu.make_async_copy(wres_hbm.at[i], wres_buf.at[slot], sem.at[slot]).wait()
        if i + 1 < NUM_RES:
            pltpu.make_async_copy(wres_hbm.at[i + 1], wres_buf.at[1 - slot],
                                  sem.at[1 - slot]).start()
        a = h
        z = jnp.dot(h.astype(jnp.bfloat16), wres_buf[slot],
                    preferred_element_type=jnp.float32) + bres_ref[i]
        h = jnp.maximum(z, 0.0) + a            # relu / residual add kept in fp32 (VPU)

    # Output head, zero-padded to 128 lanes so the final store is unmasked/lane-dense.
    out = jnp.dot(h.astype(jnp.bfloat16), wout_ref[...],
                  preferred_element_type=jnp.float32) + bout_ref[...]
    o_ref[...] = jnp.maximum(out, 0.0)


# ---------------- one-time parameter packing ---------------------------------
def pack_params(params):
    """Fold embedding + bias into one projection weight, pad head, cast weights to bf16."""
    emb_table, w_proj, b_proj, w_res, b_res, w_out, b_out = params

    # concat(x, onehot, 1) @ [Wx ; E@Wlab ; b]  ==  x@Wx + E[label]@Wlab + b
    wx = w_proj[:IN_FLAT]                               # (100, D)
    wlab = emb_table @ w_proj[IN_FLAT:]                 # (CLASS_SIZE, D), embedding folded
    merged = jnp.concatenate([wx, wlab, b_proj[None, :]], axis=0)       # (106, D)
    wproj = (jnp.zeros((K_PAD, D_MODEL), jnp.float32)
             .at[:K_REAL].set(merged)
             .astype(jnp.bfloat16))                                     # (128, D) bf16

    wres = w_res.astype(jnp.bfloat16)                                   # (7, D, D) bf16
    bres = b_res.reshape(NUM_RES, 1, D_MODEL).astype(jnp.float32)       # fp32 bias

    wout_p = (jnp.zeros((D_MODEL, OUT_PAD), jnp.float32)
              .at[:, :OUTPUT_DIM].set(w_out)
              .astype(jnp.bfloat16))                                    # (D, 128) bf16
    bout_p = jnp.zeros((1, OUT_PAD), jnp.float32).at[0, :OUTPUT_DIM].set(b_out)
    return wproj, wres, bres, wout_p, bout_p


# ---------------- wrapper -----------------------------------------------------
def mlp_resnet_forward(x, label, packed):
    wproj, wres, bres, wout_p, bout_p = packed
    bn = x.shape[0]

    x_flat = x.reshape(bn, IN_FLAT)                                       # (B, 100)
    onehot = jax.nn.one_hot(label, CLASS_SIZE, dtype=jnp.float32)         # (B, 5)
    ones = jnp.ones((bn, 1), jnp.float32)                                 # bias column
    xin = jnp.concatenate([x_flat, onehot, ones], axis=1)                 # (B, 106)
    # Pad rows to the sublane tile (8) and cols to the lane tile (128) -> full-tile loads.
    xin = jnp.zeros((B_PAD, K_PAD), jnp.float32).at[:bn, :K_REAL].set(xin)

    vmem = pl.BlockSpec(memory_space=pltpu.MemorySpace.VMEM)
    hbm = pl.BlockSpec(memory_space=pl.ANY)   # residual weights stay in HBM, manual DMA

    out = pl.pallas_call(
        mlp_resnet_kernel,
        out_shape=jax.ShapeDtypeStruct((B_PAD, OUT_PAD), jnp.float32),
        in_specs=[vmem, vmem, hbm, vmem, vmem, vmem],
        out_specs=vmem,
        scratch_shapes=[
            pltpu.VMEM((2, D_MODEL, D_MODEL), jnp.bfloat16),   # double-buffered W_res
            pltpu.SemaphoreType.DMA((2,)),
        ],
    )(xin, wproj, wres, bres, wout_p, bout_p)

    out = out[:bn, :OUTPUT_DIM]
    return out[:, 0], out[:, 1], out[:, 2]


# ---------------- pure-JAX reference (mirrors the PyTorch forward, fp32) -----
def mlp_resnet_ref(x, label, params):
    emb_table, w_proj, b_proj, w_res, b_res, w_out, b_out = params
    bn = x.shape[0]
    emb = emb_table[label]                                       # (B, 50)
    h = jnp.concatenate([x.reshape(bn, -1), emb], axis=1)        # (B, 150)
    h = jax.nn.relu(h @ w_proj + b_proj)
    for i in range(NUM_RES):
        a = h
        h = jax.nn.relu(h @ w_res[i] + b_res[i])                 # dropout = identity (eval)
        h = h + a
    o = jax.nn.relu(h @ w_out + b_out)
    return o[:, 0], o[:, 1], o[:, 2]


# ---------------- main --------------------------------------------------------
if __name__ == "__main__":
    key0 = jax.random.PRNGKey(0)
    ks = jax.random.split(key0, 9)

    # Synthetic deterministic parameters. Linear weights stored as (in, out).
    emb_table = jax.random.normal(ks[0], (CLASS_SIZE, EMBED_DIM), jnp.float32) * 0.1
    w_proj = jax.random.normal(ks[1], (IN_FLAT + EMBED_DIM, D_MODEL), jnp.float32) * 0.05
    b_proj = jax.random.normal(ks[2], (D_MODEL,), jnp.float32) * 0.05
    w_res = jax.random.normal(ks[3], (NUM_RES, D_MODEL, D_MODEL), jnp.float32) * 0.05
    b_res = jax.random.normal(ks[4], (NUM_RES, D_MODEL), jnp.float32) * 0.05
    w_out = jax.random.normal(ks[5], (D_MODEL, OUTPUT_DIM), jnp.float32) * 0.05
    b_out = jax.random.normal(ks[6], (OUTPUT_DIM,), jnp.float32) * 0.05
    params = (emb_table, w_proj, b_proj, w_res, b_res, w_out, b_out)

    x = jax.random.normal(ks[7], (B, SEQ, SHAPE), jnp.float32)
    label = jax.random.randint(ks[8], (B,), 0, CLASS_SIZE)

    packed = pack_params(params)
    weight, off1, off2 = mlp_resnet_forward(x, label, packed)
    weight, off1, off2 = jax.block_until_ready((weight, off1, off2))

    rw, r1, r2 = mlp_resnet_ref(x, label, params)
    assert weight.shape == (B,) and off1.shape == (B,) and off2.shape == (B,)
    # Tolerance loosened vs fp32: kernel uses bf16 weights / bf16 MXU inputs with fp32
    # accumulation (per perf review), reference is pure fp32.
    assert jnp.allclose(weight, rw, atol=5e-2, rtol=5e-2), "weight mismatch vs reference"
    assert jnp.allclose(off1, r1, atol=5e-2, rtol=5e-2), "offset_1 mismatch vs reference"
    assert jnp.allclose(off2, r2, atol=5e-2, rtol=5e-2), "offset_2 mismatch vs reference"

    print("KERNEL_OK")
</pallas_src>

<mosaic_0001>
module attributes {stable_mosaic.version = 11 : i64} {
  func.func @mlp_resnet_kernel(%arg0: memref<8x128xf32, #tpu.memory_space<vmem>>, %arg1: memref<128x256xbf16, #tpu.memory_space<vmem>>, %arg2: memref<7x256x256xbf16, #tpu.memory_space<any>>, %arg3: memref<7x1x256xf32, #tpu.memory_space<vmem>>, %arg4: memref<256x128xbf16, #tpu.memory_space<vmem>>, %arg5: memref<1x128xf32, #tpu.memory_space<vmem>>, %arg6: memref<8x128xf32, #tpu.memory_space<vmem>>, %arg7: memref<2x256x256xbf16, #tpu.memory_space<vmem>>, %arg8: memref<2x!tpu.dma_semaphore, #tpu.memory_space<semaphore_mem>>) attributes {dimension_semantics = [], scalar_prefetch = 0 : i64, scratch_operands = 2 : i64, tpu.core_type = #tpu.core_type<tc>} {
    %c0_i32 = arith.constant 0 : i32
    %c0_i32_0 = arith.constant 0 : i32
    %c0_i32_1 = arith.constant 0 : i32
    %c0_i32_2 = arith.constant 0 : i32
    %c0_i32_3 = arith.constant 0 : i32
    %0 = tpu.memref_slice %arg2[%c0_i32, %c0_i32_2, %c0_i32_3] : memref<7x256x256xbf16, #tpu.memory_space<any>> -> memref<1x256x256xbf16, #tpu.memory_space<any>>
    %1 = tpu.memref_squeeze %0 : memref<1x256x256xbf16, #tpu.memory_space<any>> -> memref<256x256xbf16, #tpu.memory_space<any>>
    %c0_i32_4 = arith.constant 0 : i32
    %c0_i32_5 = arith.constant 0 : i32
    %2 = tpu.memref_slice %arg7[%c0_i32_0, %c0_i32_4, %c0_i32_5] : memref<2x256x256xbf16, #tpu.memory_space<vmem>> -> memref<1x256x256xbf16, #tpu.memory_space<vmem>>
    %3 = tpu.memref_squeeze %2 : memref<1x256x256xbf16, #tpu.memory_space<vmem>> -> memref<256x256xbf16, #tpu.memory_space<vmem>>
    %4 = tpu.memref_slice %arg8[%c0_i32_1] : memref<2x!tpu.dma_semaphore, #tpu.memory_space<semaphore_mem>> -> memref<1x!tpu.dma_semaphore, #tpu.memory_space<semaphore_mem>>
    %5 = tpu.memref_squeeze %4 : memref<1x!tpu.dma_semaphore, #tpu.memory_space<semaphore_mem>> -> memref<!tpu.dma_semaphore, #tpu.memory_space<semaphore_mem>>
    tpu.enqueue_dma source(%1 : memref<256x256xbf16, #tpu.memory_space<any>>) target(%3 : memref<256x256xbf16, #tpu.memory_space<vmem>>) target_semaphore(%5 : memref<!tpu.dma_semaphore, #tpu.memory_space<semaphore_mem>>)
    %c0 = arith.constant 0 : index
    %c0_6 = arith.constant 0 : index
    %6 = vector.load %arg0[%c0, %c0_6] : memref<8x128xf32, #tpu.memory_space<vmem>>, vector<8x128xf32>
    %7 = arith.truncf %6 : vector<8x128xf32> to vector<8x128xbf16>
    %c0_7 = arith.constant 0 : index
    %c0_8 = arith.constant 0 : index
    %8 = vector.load %arg1[%c0_7, %c0_8] : memref<128x256xbf16, #tpu.memory_space<vmem>>, vector<128x256xbf16>
    %cst = arith.constant dense<0.000000e+00> : vector<8x256xf32>
    %9 = tpu.matmul %7, %8, %cst {dimension_numbers = #tpu.dot_dimension_numbers<[1], [0], [0], [1], [0, 0, 1, 1], [], []>} : vector<8x128xbf16>, vector<128x256xbf16>, vector<8x256xf32> -> vector<8x256xf32>
    %cst_9 = arith.constant 0.000000e+00 : f32
    %10 = vector.broadcast %cst_9 : f32 to vector<8x256xf32>
    %11 = arith.maximumf %9, %10 : vector<8x256xf32>
    %c0_i32_10 = arith.constant 0 : i32
    %c0_i32_11 = arith.constant 0 : i32
    %c0_i32_12 = arith.constant 0 : i32
    %c0_i32_13 = arith.constant 0 : i32
    %c0_i32_14 = arith.constant 0 : i32
    %12 = tpu.memref_slice %arg2[%c0_i32_10, %c0_i32_13, %c0_i32_14] : memref<7x256x256xbf16, #tpu.memory_space<any>> -> memref<1x256x256xbf16, #tpu.memory_space<any>>
    %13 = tpu.memref_squeeze %12 : memref<1x256x256xbf16, #tpu.memory_space<any>> -> memref<256x256xbf16, #tpu.memory_space<any>>
    %c0_i32_15 = arith.constant 0 : i32
    %c0_i32_16 = arith.constant 0 : i32
    %14 = tpu.memref_slice %arg7[%c0_i32_11, %c0_i32_15, %c0_i32_16] : memref<2x256x256xbf16, #tpu.memory_space<vmem>> -> memref<1x256x256xbf16, #tpu.memory_space<vmem>>
    %15 = tpu.memref_squeeze %14 : memref<1x256x256xbf16, #tpu.memory_space<vmem>> -> memref<256x256xbf16, #tpu.memory_space<vmem>>
    %16 = tpu.memref_slice %arg8[%c0_i32_12] : memref<2x!tpu.dma_semaphore, #tpu.memory_space<semaphore_mem>> -> memref<1x!tpu.dma_semaphore, #tpu.memory_space<semaphore_mem>>
    %17 = tpu.memref_squeeze %16 : memref<1x!tpu.dma_semaphore, #tpu.memory_space<semaphore_mem>> -> memref<!tpu.dma_semaphore, #tpu.memory_space<semaphore_mem>>
    tpu.wait_dma2 semaphore(%17 : memref<!tpu.dma_semaphore, #tpu.memory_space<semaphore_mem>>) src(%13 : memref<256x256xbf16, #tpu.memory_space<any>>) dst(%15 : memref<256x256xbf16, #tpu.memory_space<vmem>>)
    %c1_i32 = arith.constant 1 : i32
    %c1_i32_17 = arith.constant 1 : i32
    %c1_i32_18 = arith.constant 1 : i32
    %c0_i32_19 = arith.constant 0 : i32
    %c0_i32_20 = arith.constant 0 : i32
    %18 = tpu.memref_slice %arg2[%c1_i32, %c0_i32_19, %c0_i32_20] : memref<7x256x256xbf16, #tpu.memory_space<any>> -> memref<1x256x256xbf16, #tpu.memory_space<any>>
    %19 = tpu.memref_squeeze %18 : memref<1x256x256xbf16, #tpu.memory_space<any>> -> memref<256x256xbf16, #tpu.memory_space<any>>
    %c0_i32_21 = arith.constant 0 : i32
    %c0_i32_22 = arith.constant 0 : i32
    %20 = tpu.memref_slice %arg7[%c1_i32_17, %c0_i32_21, %c0_i32_22] : memref<2x256x256xbf16, #tpu.memory_space<vmem>> -> memref<1x256x256xbf16, #tpu.memory_space<vmem>>
    %21 = tpu.memref_squeeze %20 : memref<1x256x256xbf16, #tpu.memory_space<vmem>> -> memref<256x256xbf16, #tpu.memory_space<vmem>>
    %22 = tpu.memref_slice %arg8[%c1_i32_18] : memref<2x!tpu.dma_semaphore, #tpu.memory_space<semaphore_mem>> -> memref<1x!tpu.dma_semaphore, #tpu.memory_space<semaphore_mem>>
    %23 = tpu.memref_squeeze %22 : memref<1x!tpu.dma_semaphore, #tpu.memory_space<semaphore_mem>> -> memref<!tpu.dma_semaphore, #tpu.memory_space<semaphore_mem>>
    tpu.enqueue_dma source(%19 : memref<256x256xbf16, #tpu.memory_space<any>>) target(%21 : memref<256x256xbf16, #tpu.memory_space<vmem>>) target_semaphore(%23 : memref<!tpu.dma_semaphore, #tpu.memory_space<semaphore_mem>>)
    %24 = arith.truncf %11 : vector<8x256xf32> to vector<8x256xbf16>
    %c0_23 = arith.constant 0 : index
    %c0_24 = arith.constant 0 : index
    %c0_25 = arith.constant 0 : index
    %25 = vector.load %arg7[%c0_23, %c0_24, %c0_25] : memref<2x256x256xbf16, #tpu.memory_space<vmem>>, vector<1x256x256xbf16>
    %26 = vector.shape_cast %25 : vector<1x256x256xbf16> to vector<256x256xbf16>
    %cst_26 = arith.constant dense<0.000000e+00> : vector<8x256xf32>
    %27 = tpu.matmul %24, %26, %cst_26 {dimension_numbers = #tpu.dot_dimension_numbers<[1], [0], [0], [1], [0, 0, 1, 1], [], []>} : vector<8x256xbf16>, vector<256x256xbf16>, vector<8x256xf32> -> vector<8x256xf32>
    %c0_27 = arith.constant 0 : index
    %c0_28 = arith.constant 0 : index
    %c0_29 = arith.constant 0 : index
    %28 = vector.load %arg3[%c0_27, %c0_28, %c0_29] : memref<7x1x256xf32, #tpu.memory_space<vmem>>, vector<1x1x256xf32>
    %29 = vector.shape_cast %28 : vector<1x1x256xf32> to vector<1x256xf32>
    %30 = vector.broadcast %29 : vector<1x256xf32> to vector<8x256xf32>
    %31 = arith.addf %27, %30 : vector<8x256xf32>
    %cst_30 = arith.constant 0.000000e+00 : f32
    %32 = vector.broadcast %cst_30 : f32 to vector<8x256xf32>
    %33 = arith.maximumf %31, %32 : vector<8x256xf32>
    %34 = arith.addf %33, %11 : vector<8x256xf32>
    %c1_i32_31 = arith.constant 1 : i32
    %c1_i32_32 = arith.constant 1 : i32
    %c1_i32_33 = arith.constant 1 : i32
    %c0_i32_34 = arith.constant 0 : i32
    %c0_i32_35 = arith.constant 0 : i32
    %35 = tpu.memref_slice %arg2[%c1_i32_31, %c0_i32_34, %c0_i32_35] : memref<7x256x256xbf16, #tpu.memory_space<any>> -> memref<1x256x256xbf16, #tpu.memory_space<any>>
    %36 = tpu.memref_squeeze %35 : memref<1x256x256xbf16, #tpu.memory_space<any>> -> memref<256x256xbf16, #tpu.memory_space<any>>
    %c0_i32_36 = arith.constant 0 : i32
    %c0_i32_37 = arith.constant 0 : i32
    %37 = tpu.memref_slice %arg7[%c1_i32_32, %c0_i32_36, %c0_i32_37] : memref<2x256x256xbf16, #tpu.memory_space<vmem>> -> memref<1x256x256xbf16, #tpu.memory_space<vmem>>
    %38 = tpu.memref_squeeze %37 : memref<1x256x256xbf16, #tpu.memory_space<vmem>> -> memref<256x256xbf16, #tpu.memory_space<vmem>>
    %39 = tpu.memref_slice %arg8[%c1_i32_33] : memref<2x!tpu.dma_semaphore, #tpu.memory_space<semaphore_mem>> -> memref<1x!tpu.dma_semaphore, #tpu.memory_space<semaphore_mem>>
    %40 = tpu.memref_squeeze %39 : memref<1x!tpu.dma_semaphore, #tpu.memory_space<semaphore_mem>> -> memref<!tpu.dma_semaphore, #tpu.memory_space<semaphore_mem>>
    tpu.wait_dma2 semaphore(%40 : memref<!tpu.dma_semaphore, #tpu.memory_space<semaphore_mem>>) src(%36 : memref<256x256xbf16, #tpu.memory_space<any>>) dst(%38 : memref<256x256xbf16, #tpu.memory_space<vmem>>)
    %c2_i32 = arith.constant 2 : i32
    %c0_i32_38 = arith.constant 0 : i32
    %c0_i32_39 = arith.constant 0 : i32
    %c0_i32_40 = arith.constant 0 : i32
    %c0_i32_41 = arith.constant 0 : i32
    %41 = tpu.memref_slice %arg2[%c2_i32, %c0_i32_40, %c0_i32_41] : memref<7x256x256xbf16, #tpu.memory_space<any>> -> memref<1x256x256xbf16, #tpu.memory_space<any>>
    %42 = tpu.memref_squeeze %41 : memref<1x256x256xbf16, #tpu.memory_space<any>> -> memref<256x256xbf16, #tpu.memory_space<any>>
    %c0_i32_42 = arith.constant 0 : i32
    %c0_i32_43 = arith.constant 0 : i32
    %43 = tpu.memref_slice %arg7[%c0_i32_38, %c0_i32_42, %c0_i32_43] : memref<2x256x256xbf16, #tpu.memory_space<vmem>> -> memref<1x256x256xbf16, #tpu.memory_space<vmem>>
    %44 = tpu.memref_squeeze %43 : memref<1x256x256xbf16, #tpu.memory_space<vmem>> -> memref<256x256xbf16, #tpu.memory_space<vmem>>
    %45 = tpu.memref_slice %arg8[%c0_i32_39] : memref<2x!tpu.dma_semaphore, #tpu.memory_space<semaphore_mem>> -> memref<1x!tpu.dma_semaphore, #tpu.memory_space<semaphore_mem>>
    %46 = tpu.memref_squeeze %45 : memref<1x!tpu.dma_semaphore, #tpu.memory_space<semaphore_mem>> -> memref<!tpu.dma_semaphore, #tpu.memory_space<semaphore_mem>>
    tpu.enqueue_dma source(%42 : memref<256x256xbf16, #tpu.memory_space<any>>) target(%44 : memref<256x256xbf16, #tpu.memory_space<vmem>>) target_semaphore(%46 : memref<!tpu.dma_semaphore, #tpu.memory_space<semaphore_mem>>)
    %47 = arith.truncf %34 : vector<8x256xf32> to vector<8x256xbf16>
    %c1 = arith.constant 1 : index
    %c0_44 = arith.constant 0 : index
    %c0_45 = arith.constant 0 : index
    %48 = vector.load %arg7[%c1, %c0_44, %c0_45] : memref<2x256x256xbf16, #tpu.memory_space<vmem>>, vector<1x256x256xbf16>
    %49 = vector.shape_cast %48 : vector<1x256x256xbf16> to vector<256x256xbf16>
    %cst_46 = arith.constant dense<0.000000e+00> : vector<8x256xf32>
    %50 = tpu.matmul %47, %49, %cst_46 {dimension_numbers = #tpu.dot_dimension_numbers<[1], [0], [0], [1], [0, 0, 1, 1], [], []>} : vector<8x256xbf16>, vector<256x256xbf16>, vector<8x256xf32> -> vector<8x256xf32>
    %c1_47 = arith.constant 1 : index
    %c0_48 = arith.constant 0 : index
    %c0_49 = arith.constant 0 : index
    %51 = vector.load %arg3[%c1_47, %c0_48, %c0_49] : memref<7x1x256xf32, #tpu.memory_space<vmem>>, vector<1x1x256xf32>
    %52 = vector.shape_cast %51 : vector<1x1x256xf32> to vector<1x256xf32>
    %53 = vector.broadcast %52 : vector<1x256xf32> to vector<8x256xf32>
    %54 = arith.addf %50, %53 : vector<8x256xf32>
    %cst_50 = arith.constant 0.000000e+00 : f32
    %55 = vector.broadcast %cst_50 : f32 to vector<8x256xf32>
    %56 = arith.maximumf %54, %55 : vector<8x256xf32>
    %57 = arith.addf %56, %34 : vector<8x256xf32>
    %c2_i32_51 = arith.constant 2 : i32
    %c0_i32_52 = arith.constant 0 : i32
    %c0_i32_53 = arith.constant 0 : i32
    %c0_i32_54 = arith.constant 0 : i32
    %c0_i32_55 = arith.constant 0 : i32
    %58 = tpu.memref_slice %arg2[%c2_i32_51, %c0_i32_54, %c0_i32_55] : memref<7x256x256xbf16, #tpu.memory_space<any>> -> memref<1x256x256xbf16, #tpu.memory_space<any>>
    %59 = tpu.memref_squeeze %58 : memref<1x256x256xbf16, #tpu.memory_space<any>> -> memref<256x256xbf16, #tpu.memory_space<any>>
    %c0_i32_56 = arith.constant 0 : i32
    %c0_i32_57 = arith.constant 0 : i32
    %60 = tpu.memref_slice %arg7[%c0_i32_52, %c0_i32_56, %c0_i32_57] : memref<2x256x256xbf16, #tpu.memory_space<vmem>> -> memref<1x256x256xbf16, #tpu.memory_space<vmem>>
    %61 = tpu.memref_squeeze %60 : memref<1x256x256xbf16, #tpu.memory_space<vmem>> -> memref<256x256xbf16, #tpu.memory_space<vmem>>
    %62 = tpu.memref_slice %arg8[%c0_i32_53] : memref<2x!tpu.dma_semaphore, #tpu.memory_space<semaphore_mem>> -> memref<1x!tpu.dma_semaphore, #tpu.memory_space<semaphore_mem>>
    %63 = tpu.memref_squeeze %62 : memref<1x!tpu.dma_semaphore, #tpu.memory_space<semaphore_mem>> -> memref<!tpu.dma_semaphore, #tpu.memory_space<semaphore_mem>>
    tpu.wait_dma2 semaphore(%63 : memref<!tpu.dma_semaphore, #tpu.memory_space<semaphore_mem>>) src(%59 : memref<256x256xbf16, #tpu.memory_space<any>>) dst(%61 : memref<256x256xbf16, #tpu.memory_space<vmem>>)
    %c3_i32 = arith.constant 3 : i32
    %c1_i32_58 = arith.constant 1 : i32
    %c1_i32_59 = arith.constant 1 : i32
    %c0_i32_60 = arith.constant 0 : i32
    %c0_i32_61 = arith.constant 0 : i32
    %64 = tpu.memref_slice %arg2[%c3_i32, %c0_i32_60, %c0_i32_61] : memref<7x256x256xbf16, #tpu.memory_space<any>> -> memref<1x256x256xbf16, #tpu.memory_space<any>>
    %65 = tpu.memref_squeeze %64 : memref<1x256x256xbf16, #tpu.memory_space<any>> -> memref<256x256xbf16, #tpu.memory_space<any>>
    %c0_i32_62 = arith.constant 0 : i32
    %c0_i32_63 = arith.constant 0 : i32
    %66 = tpu.memref_slice %arg7[%c1_i32_58, %c0_i32_62, %c0_i32_63] : memref<2x256x256xbf16, #tpu.memory_space<vmem>> -> memref<1x256x256xbf16, #tpu.memory_space<vmem>>
    %67 = tpu.memref_squeeze %66 : memref<1x256x256xbf16, #tpu.memory_space<vmem>> -> memref<256x256xbf16, #tpu.memory_space<vmem>>
    %68 = tpu.memref_slice %arg8[%c1_i32_59] : memref<2x!tpu.dma_semaphore, #tpu.memory_space<semaphore_mem>> -> memref<1x!tpu.dma_semaphore, #tpu.memory_space<semaphore_mem>>
    %69 = tpu.memref_squeeze %68 : memref<1x!tpu.dma_semaphore, #tpu.memory_space<semaphore_mem>> -> memref<!tpu.dma_semaphore, #tpu.memory_space<semaphore_mem>>
    tpu.enqueue_dma source(%65 : memref<256x256xbf16, #tpu.memory_space<any>>) target(%67 : memref<256x256xbf16, #tpu.memory_space<vmem>>) target_semaphore(%69 : memref<!tpu.dma_semaphore, #tpu.memory_space<semaphore_mem>>)
    %70 = arith.truncf %57 : vector<8x256xf32> to vector<8x256xbf16>
    %c0_64 = arith.constant 0 : index
    %c0_65 = arith.constant 0 : index
    %c0_66 = arith.constant 0 : index
    %71 = vector.load %arg7[%c0_64, %c0_65, %c0_66] : memref<2x256x256xbf16, #tpu.memory_space<vmem>>, vector<1x256x256xbf16>
    %72 = vector.shape_cast %71 : vector<1x256x256xbf16> to vector<256x256xbf16>
    %cst_67 = arith.constant dense<0.000000e+00> : vector<8x256xf32>
    %73 = tpu.matmul %70, %72, %cst_67 {dimension_numbers = #tpu.dot_dimension_numbers<[1], [0], [0], [1], [0, 0, 1, 1], [], []>} : vector<8x256xbf16>, vector<256x256xbf16>, vector<8x256xf32> -> vector<8x256xf32>
    %c2 = arith.constant 2 : index
    %c0_68 = arith.constant 0 : index
    %c0_69 = arith.constant 0 : index
    %74 = vector.load %arg3[%c2, %c0_68, %c0_69] : memref<7x1x256xf32, #tpu.memory_space<vmem>>, vector<1x1x256xf32>
    %75 = vector.shape_cast %74 : vector<1x1x256xf32> to vector<1x256xf32>
    %76 = vector.broadcast %75 : vector<1x256xf32> to vector<8x256xf32>
    %77 = arith.addf %73, %76 : vector<8x256xf32>
    %cst_70 = arith.constant 0.000000e+00 : f32
    %78 = vector.broadcast %cst_70 : f32 to vector<8x256xf32>
    %79 = arith.maximumf %77, %78 : vector<8x256xf32>
    %80 = arith.addf %79, %57 : vector<8x256xf32>
    %c3_i32_71 = arith.constant 3 : i32
    %c1_i32_72 = arith.constant 1 : i32
    %c1_i32_73 = arith.constant 1 : i32
    %c0_i32_74 = arith.constant 0 : i32
    %c0_i32_75 = arith.constant 0 : i32
    %81 = tpu.memref_slice %arg2[%c3_i32_71, %c0_i32_74, %c0_i32_75] : memref<7x256x256xbf16, #tpu.memory_space<any>> -> memref<1x256x256xbf16, #tpu.memory_space<any>>
    %82 = tpu.memref_squeeze %81 : memref<1x256x256xbf16, #tpu.memory_space<any>> -> memref<256x256xbf16, #tpu.memory_space<any>>
    %c0_i32_76 = arith.constant 0 : i32
    %c0_i32_77 = arith.constant 0 : i32
    %83 = tpu.memref_slice %arg7[%c1_i32_72, %c0_i32_76, %c0_i32_77] : memref<2x256x256xbf16, #tpu.memory_space<vmem>> -> memref<1x256x256xbf16, #tpu.memory_space<vmem>>
    %84 = tpu.memref_squeeze %83 : memref<1x256x256xbf16, #tpu.memory_space<vmem>> -> memref<256x256xbf16, #tpu.memory_space<vmem>>
    %85 = tpu.memref_slice %arg8[%c1_i32_73] : memref<2x!tpu.dma_semaphore, #tpu.memory_space<semaphore_mem>> -> memref<1x!tpu.dma_semaphore, #tpu.memory_space<semaphore_mem>>
    %86 = tpu.memref_squeeze %85 : memref<1x!tpu.dma_semaphore, #tpu.memory_space<semaphore_mem>> -> memref<!tpu.dma_semaphore, #tpu.memory_space<semaphore_mem>>
    tpu.wait_dma2 semaphore(%86 : memref<!tpu.dma_semaphore, #tpu.memory_space<semaphore_mem>>) src(%82 : memref<256x256xbf16, #tpu.memory_space<any>>) dst(%84 : memref<256x256xbf16, #tpu.memory_space<vmem>>)
    %c4_i32 = arith.constant 4 : i32
    %c0_i32_78 = arith.constant 0 : i32
    %c0_i32_79 = arith.constant 0 : i32
    %c0_i32_80 = arith.constant 0 : i32
    %c0_i32_81 = arith.constant 0 : i32
    %87 = tpu.memref_slice %arg2[%c4_i32, %c0_i32_80, %c0_i32_81] : memref<7x256x256xbf16, #tpu.memory_space<any>> -> memref<1x256x256xbf16, #tpu.memory_space<any>>
    %88 = tpu.memref_squeeze %87 : memref<1x256x256xbf16, #tpu.memory_space<any>> -> memref<256x256xbf16, #tpu.memory_space<any>>
    %c0_i32_82 = arith.constant 0 : i32
    %c0_i32_83 = arith.constant 0 : i32
    %89 = tpu.memref_slice %arg7[%c0_i32_78, %c0_i32_82, %c0_i32_83] : memref<2x256x256xbf16, #tpu.memory_space<vmem>> -> memref<1x256x256xbf16, #tpu.memory_space<vmem>>
    %90 = tpu.memref_squeeze %89 : memref<1x256x256xbf16, #tpu.memory_space<vmem>> -> memref<256x256xbf16, #tpu.memory_space<vmem>>
    %91 = tpu.memref_slice %arg8[%c0_i32_79] : memref<2x!tpu.dma_semaphore, #tpu.memory_space<semaphore_mem>> -> memref<1x!tpu.dma_semaphore, #tpu.memory_space<semaphore_mem>>
    %92 = tpu.memref_squeeze %91 : memref<1x!tpu.dma_semaphore, #tpu.memory_space<semaphore_mem>> -> memref<!tpu.dma_semaphore, #tpu.memory_space<semaphore_mem>>
    tpu.enqueue_dma source(%88 : memref<256x256xbf16, #tpu.memory_space<any>>) target(%90 : memref<256x256xbf16, #tpu.memory_space<vmem>>) target_semaphore(%92 : memref<!tpu.dma_semaphore, #tpu.memory_space<semaphore_mem>>)
    %93 = arith.truncf %80 : vector<8x256xf32> to vector<8x256xbf16>
    %c1_84 = arith.constant 1 : index
    %c0_85 = arith.constant 0 : index
    %c0_86 = arith.constant 0 : index
    %94 = vector.load %arg7[%c1_84, %c0_85, %c0_86] : memref<2x256x256xbf16, #tpu.memory_space<vmem>>, vector<1x256x256xbf16>
    %95 = vector.shape_cast %94 : vector<1x256x256xbf16> to vector<256x256xbf16>
    %cst_87 = arith.constant dense<0.000000e+00> : vector<8x256xf32>
    %96 = tpu.matmul %93, %95, %cst_87 {dimension_numbers = #tpu.dot_dimension_numbers<[1], [0], [0], [1], [0, 0, 1, 1], [], []>} : vector<8x256xbf16>, vector<256x256xbf16>, vector<8x256xf32> -> vector<8x256xf32>
    %c3 = arith.constant 3 : index
    %c0_88 = arith.constant 0 : index
    %c0_89 = arith.constant 0 : index
    %97 = vector.load %arg3[%c3, %c0_88, %c0_89] : memref<7x1x256xf32, #tpu.memory_space<vmem>>, vector<1x1x256xf32>
    %98 = vector.shape_cast %97 : vector<1x1x256xf32> to vector<1x256xf32>
    %99 = vector.broadcast %98 : vector<1x256xf32> to vector<8x256xf32>
    %100 = arith.addf %96, %99 : vector<8x256xf32>
    %cst_90 = arith.constant 0.000000e+00 : f32
    %101 = vector.broadcast %cst_90 : f32 to vector<8x256xf32>
    %102 = arith.maximumf %100, %101 : vector<8x256xf32>
    %103 = arith.addf %102, %80 : vector<8x256xf32>
    %c4_i32_91 = arith.constant 4 : i32
    %c0_i32_92 = arith.constant 0 : i32
    %c0_i32_93 = arith.constant 0 : i32
    %c0_i32_94 = arith.constant 0 : i32
    %c0_i32_95 = arith.constant 0 : i32
    %104 = tpu.memref_slice %arg2[%c4_i32_91, %c0_i32_94, %c0_i32_95] : memref<7x256x256xbf16, #tpu.memory_space<any>> -> memref<1x256x256xbf16, #tpu.memory_space<any>>
    %105 = tpu.memref_squeeze %104 : memref<1x256x256xbf16, #tpu.memory_space<any>> -> memref<256x256xbf16, #tpu.memory_space<any>>
    %c0_i32_96 = arith.constant 0 : i32
    %c0_i32_97 = arith.constant 0 : i32
    %106 = tpu.memref_slice %arg7[%c0_i32_92, %c0_i32_96, %c0_i32_97] : memref<2x256x256xbf16, #tpu.memory_space<vmem>> -> memref<1x256x256xbf16, #tpu.memory_space<vmem>>
    %107 = tpu.memref_squeeze %106 : memref<1x256x256xbf16, #tpu.memory_space<vmem>> -> memref<256x256xbf16, #tpu.memory_space<vmem>>
    %108 = tpu.memref_slice %arg8[%c0_i32_93] : memref<2x!tpu.dma_semaphore, #tpu.memory_space<semaphore_mem>> -> memref<1x!tpu.dma_semaphore, #tpu.memory_space<semaphore_mem>>
    %109 = tpu.memref_squeeze %108 : memref<1x!tpu.dma_semaphore, #tpu.memory_space<semaphore_mem>> -> memref<!tpu.dma_semaphore, #tpu.memory_space<semaphore_mem>>
    tpu.wait_dma2 semaphore(%109 : memref<!tpu.dma_semaphore, #tpu.memory_space<semaphore_mem>>) src(%105 : memref<256x256xbf16, #tpu.memory_space<any>>) dst(%107 : memref<256x256xbf16, #tpu.memory_space<vmem>>)
    %c5_i32 = arith.constant 5 : i32
    %c1_i32_98 = arith.constant 1 : i32
    %c1_i32_99 = arith.constant 1 : i32
    %c0_i32_100 = arith.constant 0 : i32
    %c0_i32_101 = arith.constant 0 : i32
    %110 = tpu.memref_slice %arg2[%c5_i32, %c0_i32_100, %c0_i32_101] : memref<7x256x256xbf16, #tpu.memory_space<any>> -> memref<1x256x256xbf16, #tpu.memory_space<any>>
    %111 = tpu.memref_squeeze %110 : memref<1x256x256xbf16, #tpu.memory_space<any>> -> memref<256x256xbf16, #tpu.memory_space<any>>
    %c0_i32_102 = arith.constant 0 : i32
    %c0_i32_103 = arith.constant 0 : i32
    %112 = tpu.memref_slice %arg7[%c1_i32_98, %c0_i32_102, %c0_i32_103] : memref<2x256x256xbf16, #tpu.memory_space<vmem>> -> memref<1x256x256xbf16, #tpu.memory_space<vmem>>
    %113 = tpu.memref_squeeze %112 : memref<1x256x256xbf16, #tpu.memory_space<vmem>> -> memref<256x256xbf16, #tpu.memory_space<vmem>>
    %114 = tpu.memref_slice %arg8[%c1_i32_99] : memref<2x!tpu.dma_semaphore, #tpu.memory_space<semaphore_mem>> -> memref<1x!tpu.dma_semaphore, #tpu.memory_space<semaphore_mem>>
    %115 = tpu.memref_squeeze %114 : memref<1x!tpu.dma_semaphore, #tpu.memory_space<semaphore_mem>> -> memref<!tpu.dma_semaphore, #tpu.memory_space<semaphore_mem>>
    tpu.enqueue_dma source(%111 : memref<256x256xbf16, #tpu.memory_space<any>>) target(%113 : memref<256x256xbf16, #tpu.memory_space<vmem>>) target_semaphore(%115 : memref<!tpu.dma_semaphore, #tpu.memory_space<semaphore_mem>>)
    %116 = arith.truncf %103 : vector<8x256xf32> to vector<8x256xbf16>
    %c0_104 = arith.constant 0 : index
    %c0_105 = arith.constant 0 : index
    %c0_106 = arith.constant 0 : index
    %117 = vector.load %arg7[%c0_104, %c0_105, %c0_106] : memref<2x256x256xbf16, #tpu.memory_space<vmem>>, vector<1x256x256xbf16>
    %118 = vector.shape_cast %117 : vector<1x256x256xbf16> to vector<256x256xbf16>
    %cst_107 = arith.constant dense<0.000000e+00> : vector<8x256xf32>
    %119 = tpu.matmul %116, %118, %cst_107 {dimension_numbers = #tpu.dot_dimension_numbers<[1], [0], [0], [1], [0, 0, 1, 1], [], []>} : vector<8x256xbf16>, vector<256x256xbf16>, vector<8x256xf32> -> vector<8x256xf32>
    %c4 = arith.constant 4 : index
    %c0_108 = arith.constant 0 : index
    %c0_109 = arith.constant 0 : index
    %120 = vector.load %arg3[%c4, %c0_108, %c0_109] : memref<7x1x256xf32, #tpu.memory_space<vmem>>, vector<1x1x256xf32>
    %121 = vector.shape_cast %120 : vector<1x1x256xf32> to vector<1x256xf32>
    %122 = vector.broadcast %121 : vector<1x256xf32> to vector<8x256xf32>
    %123 = arith.addf %119, %122 : vector<8x256xf32>
    %cst_110 = arith.constant 0.000000e+00 : f32
    %124 = vector.broadcast %cst_110 : f32 to vector<8x256xf32>
    %125 = arith.maximumf %123, %124 : vector<8x256xf32>
    %126 = arith.addf %125, %103 : vector<8x256xf32>
    %c5_i32_111 = arith.constant 5 : i32
    %c1_i32_112 = arith.constant 1 : i32
    %c1_i32_113 = arith.constant 1 : i32
    %c0_i32_114 = arith.constant 0 : i32
    %c0_i32_115 = arith.constant 0 : i32
    %127 = tpu.memref_slice %arg2[%c5_i32_111, %c0_i32_114, %c0_i32_115] : memref<7x256x256xbf16, #tpu.memory_space<any>> -> memref<1x256x256xbf16, #tpu.memory_space<any>>
    %128 = tpu.memref_squeeze %127 : memref<1x256x256xbf16, #tpu.memory_space<any>> -> memref<256x256xbf16, #tpu.memory_space<any>>
    %c0_i32_116 = arith.constant 0 : i32
    %c0_i32_117 = arith.constant 0 : i32
    %129 = tpu.memref_slice %arg7[%c1_i32_112, %c0_i32_116, %c0_i32_117] : memref<2x256x256xbf16, #tpu.memory_space<vmem>> -> memref<1x256x256xbf16, #tpu.memory_space<vmem>>
    %130 = tpu.memref_squeeze %129 : memref<1x256x256xbf16, #tpu.memory_space<vmem>> -> memref<256x256xbf16, #tpu.memory_space<vmem>>
    %131 = tpu.memref_slice %arg8[%c1_i32_113] : memref<2x!tpu.dma_semaphore, #tpu.memory_space<semaphore_mem>> -> memref<1x!tpu.dma_semaphore, #tpu.memory_space<semaphore_mem>>
    %132 = tpu.memref_squeeze %131 : memref<1x!tpu.dma_semaphore, #tpu.memory_space<semaphore_mem>> -> memref<!tpu.dma_semaphore, #tpu.memory_space<semaphore_mem>>
    tpu.wait_dma2 semaphore(%132 : memref<!tpu.dma_semaphore, #tpu.memory_space<semaphore_mem>>) src(%128 : memref<256x256xbf16, #tpu.memory_space<any>>) dst(%130 : memref<256x256xbf16, #tpu.memory_space<vmem>>)
    %c6_i32 = arith.constant 6 : i32
    %c0_i32_118 = arith.constant 0 : i32
    %c0_i32_119 = arith.constant 0 : i32
    %c0_i32_120 = arith.constant 0 : i32
    %c0_i32_121 = arith.constant 0 : i32
    %133 = tpu.memref_slice %arg2[%c6_i32, %c0_i32_120, %c0_i32_121] : memref<7x256x256xbf16, #tpu.memory_space<any>> -> memref<1x256x256xbf16, #tpu.memory_space<any>>
    %134 = tpu.memref_squeeze %133 : memref<1x256x256xbf16, #tpu.memory_space<any>> -> memref<256x256xbf16, #tpu.memory_space<any>>
    %c0_i32_122 = arith.constant 0 : i32
    %c0_i32_123 = arith.constant 0 : i32
    %135 = tpu.memref_slice %arg7[%c0_i32_118, %c0_i32_122, %c0_i32_123] : memref<2x256x256xbf16, #tpu.memory_space<vmem>> -> memref<1x256x256xbf16, #tpu.memory_space<vmem>>
    %136 = tpu.memref_squeeze %135 : memref<1x256x256xbf16, #tpu.memory_space<vmem>> -> memref<256x256xbf16, #tpu.memory_space<vmem>>
    %137 = tpu.memref_slice %arg8[%c0_i32_119] : memref<2x!tpu.dma_semaphore, #tpu.memory_space<semaphore_mem>> -> memref<1x!tpu.dma_semaphore, #tpu.memory_space<semaphore_mem>>
    %138 = tpu.memref_squeeze %137 : memref<1x!tpu.dma_semaphore, #tpu.memory_space<semaphore_mem>> -> memref<!tpu.dma_semaphore, #tpu.memory_space<semaphore_mem>>
    tpu.enqueue_dma source(%134 : memref<256x256xbf16, #tpu.memory_space<any>>) target(%136 : memref<256x256xbf16, #tpu.memory_space<vmem>>) target_semaphore(%138 : memref<!tpu.dma_semaphore, #tpu.memory_space<semaphore_mem>>)
    %139 = arith.truncf %126 : vector<8x256xf32> to vector<8x256xbf16>
    %c1_124 = arith.constant 1 : index
    %c0_125 = arith.constant 0 : index
    %c0_126 = arith.constant 0 : index
    %140 = vector.load %arg7[%c1_124, %c0_125, %c0_126] : memref<2x256x256xbf16, #tpu.memory_space<vmem>>, vector<1x256x256xbf16>
    %141 = vector.shape_cast %140 : vector<1x256x256xbf16> to vector<256x256xbf16>
    %cst_127 = arith.constant dense<0.000000e+00> : vector<8x256xf32>
    %142 = tpu.matmul %139, %141, %cst_127 {dimension_numbers = #tpu.dot_dimension_numbers<[1], [0], [0], [1], [0, 0, 1, 1], [], []>} : vector<8x256xbf16>, vector<256x256xbf16>, vector<8x256xf32> -> vector<8x256xf32>
    %c5 = arith.constant 5 : index
    %c0_128 = arith.constant 0 : index
    %c0_129 = arith.constant 0 : index
    %143 = vector.load %arg3[%c5, %c0_128, %c0_129] : memref<7x1x256xf32, #tpu.memory_space<vmem>>, vector<1x1x256xf32>
    %144 = vector.shape_cast %143 : vector<1x1x256xf32> to vector<1x256xf32>
    %145 = vector.broadcast %144 : vector<1x256xf32> to vector<8x256xf32>
    %146 = arith.addf %142, %145 : vector<8x256xf32>
    %cst_130 = arith.constant 0.000000e+00 : f32
    %147 = vector.broadcast %cst_130 : f32 to vector<8x256xf32>
    %148 = arith.maximumf %146, %147 : vector<8x256xf32>
    %149 = arith.addf %148, %126 : vector<8x256xf32>
    %c6_i32_131 = arith.constant 6 : i32
    %c0_i32_132 = arith.constant 0 : i32
    %c0_i32_133 = arith.constant 0 : i32
    %c0_i32_134 = arith.constant 0 : i32
    %c0_i32_135 = arith.constant 0 : i32
    %150 = tpu.memref_slice %arg2[%c6_i32_131, %c0_i32_134, %c0_i32_135] : memref<7x256x256xbf16, #tpu.memory_space<any>> -> memref<1x256x256xbf16, #tpu.memory_space<any>>
    %151 = tpu.memref_squeeze %150 : memref<1x256x256xbf16, #tpu.memory_space<any>> -> memref<256x256xbf16, #tpu.memory_space<any>>
    %c0_i32_136 = arith.constant 0 : i32
    %c0_i32_137 = arith.constant 0 : i32
    %152 = tpu.memref_slice %arg7[%c0_i32_132, %c0_i32_136, %c0_i32_137] : memref<2x256x256xbf16, #tpu.memory_space<vmem>> -> memref<1x256x256xbf16, #tpu.memory_space<vmem>>
    %153 = tpu.memref_squeeze %152 : memref<1x256x256xbf16, #tpu.memory_space<vmem>> -> memref<256x256xbf16, #tpu.memory_space<vmem>>
    %154 = tpu.memref_slice %arg8[%c0_i32_133] : memref<2x!tpu.dma_semaphore, #tpu.memory_space<semaphore_mem>> -> memref<1x!tpu.dma_semaphore, #tpu.memory_space<semaphore_mem>>
    %155 = tpu.memref_squeeze %154 : memref<1x!tpu.dma_semaphore, #tpu.memory_space<semaphore_mem>> -> memref<!tpu.dma_semaphore, #tpu.memory_space<semaphore_mem>>
    tpu.wait_dma2 semaphore(%155 : memref<!tpu.dma_semaphore, #tpu.memory_space<semaphore_mem>>) src(%151 : memref<256x256xbf16, #tpu.memory_space<any>>) dst(%153 : memref<256x256xbf16, #tpu.memory_space<vmem>>)
    %156 = arith.truncf %149 : vector<8x256xf32> to vector<8x256xbf16>
    %c0_138 = arith.constant 0 : index
    %c0_139 = arith.constant 0 : index
    %c0_140 = arith.constant 0 : index
    %157 = vector.load %arg7[%c0_138, %c0_139, %c0_140] : memref<2x256x256xbf16, #tpu.memory_space<vmem>>, vector<1x256x256xbf16>
    %158 = vector.shape_cast %157 : vector<1x256x256xbf16> to vector<256x256xbf16>
    %cst_141 = arith.constant dense<0.000000e+00> : vector<8x256xf32>
    %159 = tpu.matmul %156, %158, %cst_141 {dimension_numbers = #tpu.dot_dimension_numbers<[1], [0], [0], [1], [0, 0, 1, 1], [], []>} : vector<8x256xbf16>, vector<256x256xbf16>, vector<8x256xf32> -> vector<8x256xf32>
    %c6 = arith.constant 6 : index
    %c0_142 = arith.constant 0 : index
    %c0_143 = arith.constant 0 : index
    %160 = vector.load %arg3[%c6, %c0_142, %c0_143] : memref<7x1x256xf32, #tpu.memory_space<vmem>>, vector<1x1x256xf32>
    %161 = vector.shape_cast %160 : vector<1x1x256xf32> to vector<1x256xf32>
    %162 = vector.broadcast %161 : vector<1x256xf32> to vector<8x256xf32>
    %163 = arith.addf %159, %162 : vector<8x256xf32>
    %cst_144 = arith.constant 0.000000e+00 : f32
    %164 = vector.broadcast %cst_144 : f32 to vector<8x256xf32>
    %165 = arith.maximumf %163, %164 : vector<8x256xf32>
    %166 = arith.addf %165, %149 : vector<8x256xf32>
    %167 = arith.truncf %166 : vector<8x256xf32> to vector<8x256xbf16>
    %c0_145 = arith.constant 0 : index
    %c0_146 = arith.constant 0 : index
    %168 = vector.load %arg4[%c0_145, %c0_146] : memref<256x128xbf16, #tpu.memory_space<vmem>>, vector<256x128xbf16>
    %cst_147 = arith.constant dense<0.000000e+00> : vector<8x128xf32>
    %169 = tpu.matmul %167, %168, %cst_147 {dimension_numbers = #tpu.dot_dimension_numbers<[1], [0], [0], [1], [0, 0, 1, 1], [], []>} : vector<8x256xbf16>, vector<256x128xbf16>, vector<8x128xf32> -> vector<8x128xf32>
    %c0_148 = arith.constant 0 : index
    %c0_149 = arith.constant 0 : index
    %170 = vector.load %arg5[%c0_148, %c0_149] : memref<1x128xf32, #tpu.memory_space<vmem>>, vector<1x128xf32>
    %171 = vector.broadcast %170 : vector<1x128xf32> to vector<8x128xf32>
    %172 = arith.addf %169, %171 : vector<8x128xf32>
    %cst_150 = arith.constant 0.000000e+00 : f32
    %173 = vector.broadcast %cst_150 : f32 to vector<8x128xf32>
    %174 = arith.maximumf %172, %173 : vector<8x128xf32>
    %c0_151 = arith.constant 0 : index
    %c0_152 = arith.constant 0 : index
    %175 = vector.load %arg6[%c0_151, %c0_152] : memref<8x128xf32, #tpu.memory_space<vmem>>, vector<8x128xf32>
    tpu.vector_store %arg6[%c0_151, %c0_152], %174 {strides = array<i32>} : memref<8x128xf32, #tpu.memory_space<vmem>>, vector<8x128xf32>,
    return
  }
}

</mosaic_0001>

<llo_original>
// kernel: tpu_custom_call.1
$region0: #{tpu_custom_call.1}
  #allocation0 [shape = 'u32[]', space=smem, size = 0x4, offset = 0x4, fixed_abs, tag = 'smem constant byte address 0x4 - core index']
  #allocation1 [shape = 'u32[144,128]{1,0:T(1,128)}', space=vmem, size = 0x12000, scoped, tag = 'internal scratch']
  #allocation2 [shape = 'bf16[2,256,256]{2,1,0:T(16,128)(2,1)}', space=vmem, size = 0x40000, scoped, tag = 'scratch operand']
  #allocation3 [shape = 's32[2]{0}', space=sflag, size = 0x8, scoped, tag = 'scratch operand']
  #allocation13 [shape = 's32[]', space=sflag, size = 0x4, offset = 0, fixed_abs, tag = 'sflag constant byte address 0x0 - dummy sync flag']
  #allocation15 [shape = 's32[]', space=sflag, size = 0x4, offset = 0, fixed_abs, tag = 'sflag constant byte address 0x0 - dummy sync flag']
  #allocation17 [shape = 's32[]', space=sflag, size = 0x4, offset = 0, fixed_abs, tag = 'sflag constant byte address 0x0 - dummy sync flag']
  #allocation19 [shape = 's32[]', space=sflag, size = 0x4, offset = 0, fixed_abs, tag = 'sflag constant byte address 0x0 - dummy sync flag']
  #allocation21 [shape = 's32[]', space=sflag, size = 0x4, offset = 0, fixed_abs, tag = 'sflag constant byte address 0x0 - dummy sync flag']
  #allocation23 [shape = 's32[]', space=sflag, size = 0x4, offset = 0, fixed_abs, tag = 'sflag constant byte address 0x0 - dummy sync flag']
  #allocation25 [shape = 's32[]', space=sflag, size = 0x4, offset = 0, fixed_abs, tag = 'sflag constant byte address 0x0 - dummy sync flag']
  %s0 = inlined_call_operand.hbm [shape: f32[8,128], index: 0, kind: input, shape index: {}]
  %s1 = inlined_call_operand.hbm [shape: bf16[128,256], index: 1, kind: input, shape index: {}]
  %s2 = inlined_call_operand.hbm [shape: bf16[7,256,256], index: 2, kind: input, shape index: {}]
  %s3 = inlined_call_operand.hbm [shape: f32[7,1,256], index: 3, kind: input, shape index: {}]
  %s4 = inlined_call_operand.hbm [shape: bf16[256,128], index: 4, kind: input, shape index: {}]
  %s5 = inlined_call_operand.vmem [shape: f32[1,128], index: 5, kind: input, shape index: {}]
  %s6 = inlined_call_operand.hbm [shape: f32[8,128], index: 6, kind: output, shape index: {}]
  %s7 = sld [smem:[#allocation0]]
  $region46: #{tpu_custom_call.1} parent=0
    _
  %s9 = ssub.s32 1, %s7
  %s10 = scalar_select 0, %s9, %s7
  $region1: #{tpu_custom_call.1} parent=0
    #allocation4 [shape = 'u8[4096]{0}', space=vmem, size = 0x1000, scoped, tag = 'input window, operand 0, single buffered']
    #allocation5 [shape = 's32[1]{0}', space=sflag, size = 0x4, scoped, tag = 'scoped memory for tpu_custom_call.1']
    #allocation6 [shape = 's32[1]{0}', space=sflag, size = 0x4, scoped, tag = 'scoped memory for tpu_custom_call.1']
    #allocation7 [shape = 'u8[65536]{0}', space=vmem, size = 0x10000, scoped, tag = 'input window, operand 1, single buffered']
    #allocation8 [shape = 's32[1]{0}', space=sflag, size = 0x4, scoped, tag = 'scoped memory for tpu_custom_call.1']
    #allocation9 [shape = 'u8[7168]{0}', space=vmem, size = 0x1c00, scoped, tag = 'input window, operand 3, single buffered']
    #allocation10 [shape = 'u8[65536]{0}', space=vmem, size = 0x10000, scoped, tag = 'input window, operand 4, single buffered']
    #allocation11 [shape = 's32[1]{0}', space=sflag, size = 0x4, scoped, tag = 'scoped memory for tpu_custom_call.1']
    #allocation12 [shape = 'u8[4096]{0}', space=vmem, size = 0x1000, scoped, tag = 'output window, operand 0, single buffered']
    #allocation14 [shape = 'u32[9]{0}', space=smem, size = 0x24, scoped, tag = 'DMA stride descriptor']
    #allocation16 [shape = 'u32[9]{0}', space=smem, size = 0x24, scoped, tag = 'DMA stride descriptor']
    #allocation18 [shape = 'u32[9]{0}', space=smem, size = 0x24, scoped, tag = 'DMA stride descriptor']
    #allocation20 [shape = 'u32[9]{0}', space=smem, size = 0x24, scoped, tag = 'DMA stride descriptor']
    #allocation22 [shape = 'u32[9]{0}', space=smem, size = 0x24, scoped, tag = 'DMA stride descriptor']
    #allocation24 [shape = 'u32[9]{0}', space=smem, size = 0x24, scoped, tag = 'DMA stride descriptor']
    #allocation26 [shape = 'u32[9]{0}', space=smem, size = 0x24, scoped, tag = 'DMA stride descriptor']
    %11 = vsyncpa [#allocation5], 0
    %12 = vsyncpa [#allocation8], 0
    %13 = vsyncpa [#allocation11], 0
    %14 = vsyncpa [#allocation6], 0
    // Predicated region
    $region2: #{tpu_custom_call.1} parent=1 // pred_check
      _
    $region3: #{tpu_custom_call.1} parent=1 // pred_check_branch
      %16 = sbr.rel (0) target = $region5
    $region4: #{tpu_custom_call.1} parent=1 // pred_region
      %s18 = ssub.s32 128, 128
      %19 = vsyncadd [#allocation5], %s18
      %s21 = sshll.u32 [#allocation4], 4
      %s22 = int_to_ptr.vmem [resolvable:$true] %s21
      %24 = dma.hbm_to_vmem [thread:$0]  %s0, 128, %s22, [#allocation5]
    $region5: #{tpu_custom_call.1} parent=1 // pred_fallthru
      _
    // Predicated region
    $region6: #{tpu_custom_call.1} parent=1 // pred_check
      _
    $region7: #{tpu_custom_call.1} parent=1 // pred_check_branch
      %26 = sbr.rel (0) target = $region9
    $region8: #{tpu_custom_call.1} parent=1 // pred_region
      %s28 = ssub.s32 2048, 2048
      %29 = vsyncadd [#allocation8], %s28
      %s30 = sshll.u32 [#allocation7], 4
      %s31 = int_to_ptr.vmem [resolvable:$true] %s30
      %36 = dma.hbm_to_vmem [thread:$0]  %s1, 2048, %s31, [#allocation8], 128, 128, 8
    $region9: #{tpu_custom_call.1} parent=1 // pred_fallthru
      _
    // Predicated region
    $region10: #{tpu_custom_call.1} parent=1 // pred_check
      _
    $region11: #{tpu_custom_call.1} parent=1 // pred_check_branch
      %38 = sbr.rel (0) target = $region13
    $region12: #{tpu_custom_call.1} parent=1 // pred_region
      %s40 = ssub.s32 224, 224
      %41 = vsyncadd [#allocation8], %s40
      %s42 = sshll.u32 [#allocation9], 4
      %s43 = int_to_ptr.vmem [resolvable:$true] %s42
      %48 = dma.hbm_to_vmem [thread:$0]  %s3, 224, %s43, [#allocation8], 32, 32, 2
    $region13: #{tpu_custom_call.1} parent=1 // pred_fallthru
      _
    // Predicated region
    $region14: #{tpu_custom_call.1} parent=1 // pred_check
      _
    $region15: #{tpu_custom_call.1} parent=1 // pred_check_branch
      %50 = sbr.rel (0) target = $region17
    $region16: #{tpu_custom_call.1} parent=1 // pred_region
      %s52 = ssub.s32 2048, 2048
      %53 = vsyncadd [#allocation11], %s52
      %s54 = sshll.u32 [#allocation10], 4
      %s55 = int_to_ptr.vmem [resolvable:$true] %s54
      %60 = dma.hbm_to_vmem [thread:$0]  %s4, 2048, %s55, [#allocation11], 64, 64, 4
    $region17: #{tpu_custom_call.1} parent=1 // pred_fallthru
      _
    // Predicated region
    $region18: #{tpu_custom_call.1} parent=1 // pred_check
      _
    $region19: #{tpu_custom_call.1} parent=1 // pred_check_branch
      %62 = sbr.rel (0) target = $region21
    $region20: #{tpu_custom_call.1} parent=1 // pred_region
      _
    $region21: #{tpu_custom_call.1} parent=1 // pred_fallthru
      _
    // Predicated region
    $region22: #{tpu_custom_call.1} parent=1 // pred_check
      _
    $region23: #{tpu_custom_call.1} parent=1 // pred_check_branch
      %64 = sbr.rel (0) target = $region25
    $region24: #{tpu_custom_call.1} parent=1 // pred_region
      %65 = dma.done [#allocation5], 128
    $region25: #{tpu_custom_call.1} parent=1 // pred_fallthru
      _
    // Predicated region
    $region26: #{tpu_custom_call.1} parent=1 // pred_check
      _
    $region27: #{tpu_custom_call.1} parent=1 // pred_check_branch
      %67 = sbr.rel (0) target = $region29
    $region28: #{tpu_custom_call.1} parent=1 // pred_region
      %68 = dma.done [#allocation8], 2048
    $region29: #{tpu_custom_call.1} parent=1 // pred_fallthru
      _
    // Predicated region
    $region30: #{tpu_custom_call.1} parent=1 // pred_check
      _
    $region31: #{tpu_custom_call.1} parent=1 // pred_check_branch
      %70 = sbr.rel (0) target = $region33
    $region32: #{tpu_custom_call.1} parent=1 // pred_region
      %71 = dma.done [#allocation8], 224
    $region33: #{tpu_custom_call.1} parent=1 // pred_fallthru
      _
    // Predicated region
    $region34: #{tpu_custom_call.1} parent=1 // pred_check
      _
    $region35: #{tpu_custom_call.1} parent=1 // pred_check_branch
      %73 = sbr.rel (0) target = $region37
    $region36: #{tpu_custom_call.1} parent=1 // pred_region
      %74 = dma.done [#allocation11], 2048
    $region37: #{tpu_custom_call.1} parent=1 // pred_fallthru
      _
    %s77 = sshll.u32 1, 14
    %s78 = sxor.u32 4294967295, %s77
    %s80 = sld [smem:[#allocation0]]
    %s81 = sadd.s32 2, %s80
    %s83 = sshll.u32 7, 26
    %s84 = sxor.u32 4294967295, %s83
    %s85 = sand.u32 0, %s84
    %s86 = sshll.u32 %s81, 26
    %s87 = sor.u32 %s85, %s86
    %s88 = sshll.u32 [#allocation2], 4
    %s89 = int_to_ptr.vmem [resolvable:$true] %s88
    %92 = sst [smem:[#allocation14]] 256
    %s93 = scalar_lea.smem [#allocation14], 1
    %94 = sst [smem:[%s93]] 256
    %s95 = scalar_lea.smem [#allocation14], 2
    %96 = sst [smem:[%s95]] 2
    %s97 = scalar_lea.smem [#allocation14], 3
    %98 = sst [smem:[%s97]] 64
    %s99 = scalar_lea.smem [#allocation14], 4
    %100 = sst [smem:[%s99]] 128
    %s101 = scalar_lea.smem [#allocation14], 5
    %102 = sst [smem:[%s101]] 2
    %s103 = scalar_lea.smem [#allocation14], 6
    %104 = sst [smem:[%s103]] 128
    %s105 = scalar_lea.smem [#allocation14], 7
    %106 = sst [smem:[%s105]] 64
    %s107 = scalar_lea.smem [#allocation14], 8
    %108 = sst [smem:[%s107]] 4
    %110 = dma.general %s2, 4096, %s89, [#allocation3], [#allocation13], [#allocation14], %s87, 0
    %v111 = vld [vmem:[#allocation4] sm:$0xff]
    %v112 = vpack.c.bf16 %v111, %v111
    %v113 = vld [vmem:[#allocation7] sm:$0xff]
    %v114 = vld [vmem:[#allocation7 + $0x8] sm:$0xff]
    %v115 = vld [vmem:[#allocation7 + $0x10] sm:$0xff]
    %v116 = vld [vmem:[#allocation7 + $0x18] sm:$0xff]
    %v117 = vld [vmem:[#allocation7 + $0x20] sm:$0xff]
    %v118 = vld [vmem:[#allocation7 + $0x28] sm:$0xff]
    %v119 = vld [vmem:[#allocation7 + $0x30] sm:$0xff]
    %v120 = vld [vmem:[#allocation7 + $0x38] sm:$0xff]
    %v121 = vld [vmem:[#allocation7 + $0x40] sm:$0xff]
    %v122 = vld [vmem:[#allocation7 + $0x48] sm:$0xff]
    %v123 = vld [vmem:[#allocation7 + $0x50] sm:$0xff]
    %v124 = vld [vmem:[#allocation7 + $0x58] sm:$0xff]
    %v125 = vld [vmem:[#allocation7 + $0x60] sm:$0xff]
    %v126 = vld [vmem:[#allocation7 + $0x68] sm:$0xff]
    %v127 = vld [vmem:[#allocation7 + $0x70] sm:$0xff]
    %v128 = vld [vmem:[#allocation7 + $0x78] sm:$0xff]
    %v145 = vunpack.c.l.b16 %v113
    %v146 = vunpack.c.h.b16 %v113
    %v147 = vunpack.c.l.b16 %v114
    %v148 = vunpack.c.h.b16 %v114
    %v149 = vunpack.c.l.b16 %v115
    %v150 = vunpack.c.h.b16 %v115
    %v151 = vunpack.c.l.b16 %v116
    %v152 = vunpack.c.h.b16 %v116
    %v153 = vunpack.c.l.b16 %v117
    %v154 = vunpack.c.h.b16 %v117
    %v155 = vunpack.c.l.b16 %v118
    %v156 = vunpack.c.h.b16 %v118
    %v157 = vunpack.c.l.b16 %v119
    %v158 = vunpack.c.h.b16 %v119
    %v159 = vunpack.c.l.b16 %v120
    %v160 = vunpack.c.h.b16 %v120
    %v161 = vunpack.c.l.b16 %v121
    %v162 = vunpack.c.h.b16 %v121
    %v163 = vunpack.c.l.b16 %v122
    %v164 = vunpack.c.h.b16 %v122
    %v165 = vunpack.c.l.b16 %v123
    %v166 = vunpack.c.h.b16 %v123
    %v167 = vunpack.c.l.b16 %v124
    %v168 = vunpack.c.h.b16 %v124
    %v169 = vunpack.c.l.b16 %v125
    %v170 = vunpack.c.h.b16 %v125
    %v171 = vunpack.c.l.b16 %v126
    %v172 = vunpack.c.h.b16 %v126
    %v173 = vunpack.c.l.b16 %v127
    %v174 = vunpack.c.h.b16 %v127
    %v175 = vunpack.c.l.b16 %v128
    %v176 = vunpack.c.h.b16 %v128
    %v177 = vpack.c.b16 %v147, %v145
    %v178 = vpack.c.b16 %v148, %v146
    %v179 = vpack.c.b16 %v151, %v149
    %v180 = vpack.c.b16 %v152, %v150
    %v181 = vpack.c.b16 %v155, %v153
    %v182 = vpack.c.b16 %v156, %v154
    %v183 = vpack.c.b16 %v159, %v157
    %v184 = vpack.c.b16 %v160, %v158
    %v185 = vpack.c.b16 %v163, %v161
    %v186 = vpack.c.b16 %v164, %v162
    %v187 = vpack.c.b16 %v167, %v165
    %v188 = vpack.c.b16 %v168, %v166
    %v189 = vpack.c.b16 %v171, %v169
    %v190 = vpack.c.b16 %v172, %v170
    %v191 = vpack.c.b16 %v175, %v173
    %v192 = vpack.c.b16 %v176, %v174
    %209 = vmatprep.subr.bf16.mxu0 %v178
    %210 = vmatpush1.bf16.msra.mxu0 %v177
    %211 = vmatprep.subr.bf16.mxu0 %v180
    %212 = vmatpush1.bf16.msra.mxu0 %v179
    %213 = vmatprep.subr.bf16.mxu0 %v182
    %214 = vmatpush1.bf16.msra.mxu0 %v181
    %215 = vmatprep.subr.bf16.mxu0 %v184
    %216 = vmatpush1.bf16.msra.mxu0 %v183
    %217 = vmatprep.subr.bf16.mxu0 %v186
    %218 = vmatpush1.bf16.msra.mxu0 %v185
    %219 = vmatprep.subr.bf16.mxu0 %v188
    %220 = vmatpush1.bf16.msra.mxu0 %v187
    %221 = vmatprep.subr.bf16.mxu0 %v190
    %222 = vmatpush1.bf16.msra.mxu0 %v189
    %223 = vmatprep.subr.bf16.mxu0 %v192
    %224 = vmatpush1.bf16.msra.mxu0 %v191
    %225 = vmatprep.subr.bf16.mxu0 0
    %226 = vmatpush1.bf16.msra.mxu0 0
    %227 = vmatprep.subr.bf16.mxu0 0
    %228 = vmatpush1.bf16.msra.mxu0 0
    %229 = vmatprep.subr.bf16.mxu0 0
    %230 = vmatpush1.bf16.msra.mxu0 0
    %231 = vmatprep.subr.bf16.mxu0 0
    %232 = vmatpush1.bf16.msra.mxu0 0
    %233 = vmatprep.subr.bf16.mxu0 0
    %234 = vmatpush1.bf16.msra.mxu0 0
    %235 = vmatprep.subr.bf16.mxu0 0
    %236 = vmatpush1.bf16.msra.mxu0 0
    %237 = vmatprep.subr.bf16.mxu0 0
    %238 = vmatpush1.bf16.msra.mxu0 0
    %239 = vmatprep.subr.bf16.mxu0 0
    %240 = vmatpush1.bf16.msra.mxu0 0
    %241 = vmatprep.mubr.bf16.mxu0 0
    %242 = vmatmul.mubr.bf16.gmra.mrb[0].mxu0 %v112
    %v243 = vpop.f32.mrb[0].mxu0
    %v244 = vadd.f32 0.0, %v243
    %v245 = vpop.f32.mrb[0].mxu0
    %v246 = vadd.f32 0.0, %v245
    %v247 = vpop.f32.mrb[0].mxu0
    %v248 = vpop.f32.mrb[0].mxu0
    %249 = vdwg.mxu0
    %v250 = vmax.f32 %v244, 0.0
    %v251 = vmax.f32 %v246, 0.0
    %s252 = smul.u32 4, 32
    %s253 = smul.u32 %s252, 2
    %s254 = sshll.u32 %s253, 4
    %255 = dma.done [#allocation3], %s254
    %s256 = scalar_lea.hbm %s2, 4096
    %s257 = scalar_lea.vmem [#allocation2], 256
    %s258 = scalar_lea.sflag [#allocation3], 1
    %s260 = sshll.u32 1, 14
    %s261 = sxor.u32 4294967295, %s260
    %s263 = sadd.s32 2, %s80
    %s265 = sshll.u32 7, 26
    %s266 = sxor.u32 4294967295, %s265
    %s267 = sand.u32 0, %s266
    %s268 = sshll.u32 %s263, 26
    %s269 = sor.u32 %s267, %s268
    %s270 = sshll.u32 %s257, 4
    %s271 = int_to_ptr.vmem [resolvable:$true] %s270
    %274 = sst [smem:[#allocation16]] 256
    %s275 = scalar_lea.smem [#allocation16], 1
    %276 = sst [smem:[%s275]] 256
    %s277 = scalar_lea.smem [#allocation16], 2
    %278 = sst [smem:[%s277]] 2
    %s279 = scalar_lea.smem [#allocation16], 3
    %280 = sst [smem:[%s279]] 64
    %s281 = scalar_lea.smem [#allocation16], 4
    %282 = sst [smem:[%s281]] 128
    %s283 = scalar_lea.smem [#allocation16], 5
    %284 = sst [smem:[%s283]] 2
    %s285 = scalar_lea.smem [#allocation16], 6
    %286 = sst [smem:[%s285]] 128
    %s287 = scalar_lea.smem [#allocation16], 7
    %288 = sst [smem:[%s287]] 64
    %s289 = scalar_lea.smem [#allocation16], 8
    %290 = sst [smem:[%s289]] 4
    %292 = dma.general %s256, 4096, %s271, %s258, [#allocation15], [#allocation16], %s269, 0
    %v293 = vpack.c.bf16 %v250, %v250
    %v294 = vpack.c.bf16 %v251, %v251
    %v295 = vld [vmem:[#allocation2] sm:$0xff]
    %v296 = vld [vmem:[#allocation2 + $0x8] sm:$0xff]
    %v297 = vld [vmem:[#allocation2 + $0x10] sm:$0xff]
    %v298 = vld [vmem:[#allocation2 + $0x18] sm:$0xff]
    %v299 = vld [vmem:[#allocation2 + $0x20] sm:$0xff]
    %v300 = vld [vmem:[#allocation2 + $0x28] sm:$0xff]
    %v301 = vld [vmem:[#allocation2 + $0x30] sm:$0xff]
    %v302 = vld [vmem:[#allocation2 + $0x38] sm:$0xff]
    %v303 = vld [vmem:[#allocation2 + $0x40] sm:$0xff]
    %v304 = vld [vmem:[#allocation2 + $0x48] sm:$0xff]
    %v305 = vld [vmem:[#allocation2 + $0x50] sm:$0xff]
    %v306 = vld [vmem:[#allocation2 + $0x58] sm:$0xff]
    %v307 = vld [vmem:[#allocation2 + $0x60] sm:$0xff]
    %v308 = vld [vmem:[#allocation2 + $0x68] sm:$0xff]
    %v309 = vld [vmem:[#allocation2 + $0x70] sm:$0xff]
    %v310 = vld [vmem:[#allocation2 + $0x78] sm:$0xff]
    %v311 = vld [vmem:[#allocation2 + $0x80] sm:$0xff]
    %v312 = vld [vmem:[#allocation2 + $0x88] sm:$0xff]
    %v313 = vld [vmem:[#allocation2 + $0x90] sm:$0xff]
    %v314 = vld [vmem:[#allocation2 + $0x98] sm:$0xff]
    %v315 = vld [vmem:[#allocation2 + $0xa0] sm:$0xff]
    %v316 = vld [vmem:[#allocation2 + $0xa8] sm:$0xff]
    %v317 = vld [vmem:[#allocation2 + $0xb0] sm:$0xff]
    %v318 = vld [vmem:[#allocation2 + $0xb8] sm:$0xff]
    %v319 = vld [vmem:[#allocation2 + $0xc0] sm:$0xff]
    %v320 = vld [vmem:[#allocation2 + $0xc8] sm:$0xff]
    %v321 = vld [vmem:[#allocation2 + $0xd0] sm:$0xff]
    %v322 = vld [vmem:[#allocation2 + $0xd8] sm:$0xff]
    %v323 = vld [vmem:[#allocation2 + $0xe0] sm:$0xff]
    %v324 = vld [vmem:[#allocation2 + $0xe8] sm:$0xff]
    %v325 = vld [vmem:[#allocation2 + $0xf0] sm:$0xff]
    %v326 = vld [vmem:[#allocation2 + $0xf8] sm:$0xff]
    %v327 = vld [vmem:[#allocation9] sm:$0x3]
    %v329 = vlaneseq
    %v330 = vshrl.u32 %v329, 7
    %v331 = vsub.s32 0, %v330
    %v332 = vrot.slane %v327, %v331
    %v333 = vlaneseq
    %v334 = vshrl.u32 %v333, 7
    %v335 = vsub.s32 1, %v334
    %v336 = vrot.slane %v327, %v335
    %339 = vmatprep.subr.bf16.mxu0 %v296
    %340 = vmatpush1.bf16.msra.mxu0 %v295
    %341 = vmatprep.subr.bf16.mxu0 %v298
    %342 = vmatpush1.bf16.msra.mxu0 %v297
    %343 = vmatprep.subr.bf16.mxu0 %v300
    %344 = vmatpush1.bf16.msra.mxu0 %v299
    %345 = vmatprep.subr.bf16.mxu0 %v302
    %346 = vmatpush1.bf16.msra.mxu0 %v301
    %347 = vmatprep.subr.bf16.mxu0 %v304
    %348 = vmatpush1.bf16.msra.mxu0 %v303
    %349 = vmatprep.subr.bf16.mxu0 %v306
    %350 = vmatpush1.bf16.msra.mxu0 %v305
    %351 = vmatprep.subr.bf16.mxu0 %v308
    %352 = vmatpush1.bf16.msra.mxu0 %v307
    %353 = vmatprep.subr.bf16.mxu0 %v310
    %354 = vmatpush1.bf16.msra.mxu0 %v309
    %355 = vmatprep.subr.bf16.mxu0 %v312
    %356 = vmatpush1.bf16.msra.mxu0 %v311
    %357 = vmatprep.subr.bf16.mxu0 %v314
    %358 = vmatpush1.bf16.msra.mxu0 %v313
    %359 = vmatprep.subr.bf16.mxu0 %v316
    %360 = vmatpush1.bf16.msra.mxu0 %v315
    %361 = vmatprep.subr.bf16.mxu0 %v318
    %362 = vmatpush1.bf16.msra.mxu0 %v317
    %363 = vmatprep.subr.bf16.mxu0 %v320
    %364 = vmatpush1.bf16.msra.mxu0 %v319
    %365 = vmatprep.subr.bf16.mxu0 %v322
    %366 = vmatpush1.bf16.msra.mxu0 %v321
    %367 = vmatprep.subr.bf16.mxu0 %v324
    %368 = vmatpush1.bf16.msra.mxu0 %v323
    %369 = vmatprep.subr.bf16.mxu0 %v326
    %370 = vmatpush1.bf16.msra.mxu0 %v325
    %371 = vmatprep.mubr.bf16.mxu0 %v294
    %372 = vmatmul.mubr.bf16.gmra.mrb[0].mxu0 %v293
    %v373 = vpop.f32.mrb[0].mxu0
    %v374 = vadd.f32 %v332, %v373
    %v375 = vpop.f32.mrb[0].mxu0
    %v376 = vadd.f32 %v336, %v375
    %v377 = vpop.f32.mrb[0].mxu0
    %v378 = vpop.f32.mrb[0].mxu0
    %379 = vdwg.mxu0
    %v380 = vmax.f32 %v374, 0.0
    %v381 = vmax.f32 %v376, 0.0
    %v382 = vadd.f32 %v380, %v250
    %v383 = vadd.f32 %v381, %v251
    %s384 = sshll.u32 %s253, 4
    %385 = dma.done %s258, %s384
    %s386 = scalar_lea.hbm %s2, 8192
    %s388 = sshll.u32 1, 14
    %s389 = sxor.u32 4294967295, %s388
    %s391 = sadd.s32 2, %s80
    %s393 = sshll.u32 7, 26
    %s394 = sxor.u32 4294967295, %s393
    %s395 = sand.u32 0, %s394
    %s396 = sshll.u32 %s391, 26
    %s397 = sor.u32 %s395, %s396
    %s398 = sshll.u32 [#allocation2], 4
    %s399 = int_to_ptr.vmem [resolvable:$true] %s398
    %402 = sst [smem:[#allocation18]] 256
    %s403 = scalar_lea.smem [#allocation18], 1
    %404 = sst [smem:[%s403]] 256
    %s405 = scalar_lea.smem [#allocation18], 2
    %406 = sst [smem:[%s405]] 2
    %s407 = scalar_lea.smem [#allocation18], 3
    %408 = sst [smem:[%s407]] 64
    %s409 = scalar_lea.smem [#allocation18], 4
    %410 = sst [smem:[%s409]] 128
    %s411 = scalar_lea.smem [#allocation18], 5
    %412 = sst [smem:[%s411]] 2
    %s413 = scalar_lea.smem [#allocation18], 6
    %414 = sst [smem:[%s413]] 128
    %s415 = scalar_lea.smem [#allocation18], 7
    %416 = sst [smem:[%s415]] 64
    %s417 = scalar_lea.smem [#allocation18], 8
    %418 = sst [smem:[%s417]] 4
    %420 = dma.general %s386, 4096, %s399, [#allocation3], [#allocation17], [#allocation18], %s397, 0
    %v421 = vpack.c.bf16 %v382, %v382
    %v422 = vpack.c.bf16 %v383, %v383
    %v423 = vld [vmem:[%s257] sm:$0xff]
    %v424 = vld [vmem:[%s257 + $0x8] sm:$0xff]
    %v425 = vld [vmem:[%s257 + $0x10] sm:$0xff]
    %v426 = vld [vmem:[%s257 + $0x18] sm:$0xff]
    %v427 = vld [vmem:[%s257 + $0x20] sm:$0xff]
    %v428 = vld [vmem:[%s257 + $0x28] sm:$0xff]
    %v429 = vld [vmem:[%s257 + $0x30] sm:$0xff]
    %v430 = vld [vmem:[%s257 + $0x38] sm:$0xff]
    %v431 = vld [vmem:[%s257 + $0x40] sm:$0xff]
    %v432 = vld [vmem:[%s257 + $0x48] sm:$0xff]
    %v433 = vld [vmem:[%s257 + $0x50] sm:$0xff]
    %v434 = vld [vmem:[%s257 + $0x58] sm:$0xff]
    %v435 = vld [vmem:[%s257 + $0x60] sm:$0xff]
    %v436 = vld [vmem:[%s257 + $0x68] sm:$0xff]
    %v437 = vld [vmem:[%s257 + $0x70] sm:$0xff]
    %v438 = vld [vmem:[%s257 + $0x78] sm:$0xff]
    %v439 = vld [vmem:[%s257 + $0x80] sm:$0xff]
    %v440 = vld [vmem:[%s257 + $0x88] sm:$0xff]
    %v441 = vld [vmem:[%s257 + $0x90] sm:$0xff]
    %v442 = vld [vmem:[%s257 + $0x98] sm:$0xff]
    %v443 = vld [vmem:[%s257 + $0xa0] sm:$0xff]
    %v444 = vld [vmem:[%s257 + $0xa8] sm:$0xff]
    %v445 = vld [vmem:[%s257 + $0xb0] sm:$0xff]
    %v446 = vld [vmem:[%s257 + $0xb8] sm:$0xff]
    %v447 = vld [vmem:[%s257 + $0xc0] sm:$0xff]
    %v448 = vld [vmem:[%s257 + $0xc8] sm:$0xff]
    %v449 = vld [vmem:[%s257 + $0xd0] sm:$0xff]
    %v450 = vld [vmem:[%s257 + $0xd8] sm:$0xff]
    %v451 = vld [vmem:[%s257 + $0xe0] sm:$0xff]
    %v452 = vld [vmem:[%s257 + $0xe8] sm:$0xff]
    %v453 = vld [vmem:[%s257 + $0xf0] sm:$0xff]
    %v454 = vld [vmem:[%s257 + $0xf8] sm:$0xff]
    %s455 = scalar_lea.vmem [#allocation9], 2
    %v456 = vld [vmem:[%s455] sm:$0x3]
    %v458 = vlaneseq
    %v459 = vshrl.u32 %v458, 7
    %v460 = vsub.s32 0, %v459
    %v461 = vrot.slane %v456, %v460
    %v462 = vlaneseq
    %v463 = vshrl.u32 %v462, 7
    %v464 = vsub.s32 1, %v463
    %v465 = vrot.slane %v456, %v464
    %468 = vmatprep.subr.bf16.mxu0 %v424
    %469 = vmatpush1.bf16.msra.mxu0 %v423
    %470 = vmatprep.subr.bf16.mxu0 %v426
    %471 = vmatpush1.bf16.msra.mxu0 %v425
    %472 = vmatprep.subr.bf16.mxu0 %v428
    %473 = vmatpush1.bf16.msra.mxu0 %v427
    %474 = vmatprep.subr.bf16.mxu0 %v430
    %475 = vmatpush1.bf16.msra.mxu0 %v429
    %476 = vmatprep.subr.bf16.mxu0 %v432
    %477 = vmatpush1.bf16.msra.mxu0 %v431
    %478 = vmatprep.subr.bf16.mxu0 %v434
    %479 = vmatpush1.bf16.msra.mxu0 %v433
    %480 = vmatprep.subr.bf16.mxu0 %v436
    %481 = vmatpush1.bf16.msra.mxu0 %v435
    %482 = vmatprep.subr.bf16.mxu0 %v438
    %483 = vmatpush1.bf16.msra.mxu0 %v437
    %484 = vmatprep.subr.bf16.mxu0 %v440
    %485 = vmatpush1.bf16.msra.mxu0 %v439
    %486 = vmatprep.subr.bf16.mxu0 %v442
    %487 = vmatpush1.bf16.msra.mxu0 %v441
    %488 = vmatprep.subr.bf16.mxu0 %v444
    %489 = vmatpush1.bf16.msra.mxu0 %v443
    %490 = vmatprep.subr.bf16.mxu0 %v446
    %491 = vmatpush1.bf16.msra.mxu0 %v445
    %492 = vmatprep.subr.bf16.mxu0 %v448
    %493 = vmatpush1.bf16.msra.mxu0 %v447
    %494 = vmatprep.subr.bf16.mxu0 %v450
    %495 = vmatpush1.bf16.msra.mxu0 %v449
    %496 = vmatprep.subr.bf16.mxu0 %v452
    %497 = vmatpush1.bf16.msra.mxu0 %v451
    %498 = vmatprep.subr.bf16.mxu0 %v454
    %499 = vmatpush1.bf16.msra.mxu0 %v453
    %500 = vmatprep.mubr.bf16.mxu0 %v422
    %501 = vmatmul.mubr.bf16.gmra.mrb[0].mxu0 %v421
    %v502 = vpop.f32.mrb[0].mxu0
    %v503 = vadd.f32 %v461, %v502
    %v504 = vpop.f32.mrb[0].mxu0
    %v505 = vadd.f32 %v465, %v504
    %v506 = vpop.f32.mrb[0].mxu0
    %v507 = vpop.f32.mrb[0].mxu0
    %508 = vdwg.mxu0
    %v509 = vmax.f32 %v503, 0.0
    %v510 = vmax.f32 %v505, 0.0
    %v511 = vadd.f32 %v509, %v382
    %v512 = vadd.f32 %v510, %v383
    %s513 = sshll.u32 %s253, 4
    %514 = dma.done [#allocation3], %s513
    %s515 = scalar_lea.hbm %s2, 12288
    %s517 = sshll.u32 1, 14
    %s518 = sxor.u32 4294967295, %s517
    %s520 = sadd.s32 2, %s80
    %s522 = sshll.u32 7, 26
    %s523 = sxor.u32 4294967295, %s522
    %s524 = sand.u32 0, %s523
    %s525 = sshll.u32 %s520, 26
    %s526 = sor.u32 %s524, %s525
    %s527 = sshll.u32 %s257, 4
    %s528 = int_to_ptr.vmem [resolvable:$true] %s527
    %531 = sst [smem:[#allocation20]] 256
    %s532 = scalar_lea.smem [#allocation20], 1
    %533 = sst [smem:[%s532]] 256
    %s534 = scalar_lea.smem [#allocation20], 2
    %535 = sst [smem:[%s534]] 2
    %s536 = scalar_lea.smem [#allocation20], 3
    %537 = sst [smem:[%s536]] 64
    %s538 = scalar_lea.smem [#allocation20], 4
    %539 = sst [smem:[%s538]] 128
    %s540 = scalar_lea.smem [#allocation20], 5
    %541 = sst [smem:[%s540]] 2
    %s542 = scalar_lea.smem [#allocation20], 6
    %543 = sst [smem:[%s542]] 128
    %s544 = scalar_lea.smem [#allocation20], 7
    %545 = sst [smem:[%s544]] 64
    %s546 = scalar_lea.smem [#allocation20], 8
    %547 = sst [smem:[%s546]] 4
    %549 = dma.general %s515, 4096, %s528, %s258, [#allocation19], [#allocation20], %s526, 0
    %v550 = vpack.c.bf16 %v511, %v511
    %v551 = vpack.c.bf16 %v512, %v512
    %v552 = vld [vmem:[#allocation2] sm:$0xff]
    %v553 = vld [vmem:[#allocation2 + $0x8] sm:$0xff]
    %v554 = vld [vmem:[#allocation2 + $0x10] sm:$0xff]
    %v555 = vld [vmem:[#allocation2 + $0x18] sm:$0xff]
    %v556 = vld [vmem:[#allocation2 + $0x20] sm:$0xff]
    %v557 = vld [vmem:[#allocation2 + $0x28] sm:$0xff]
    %v558 = vld [vmem:[#allocation2 + $0x30] sm:$0xff]
    %v559 = vld [vmem:[#allocation2 + $0x38] sm:$0xff]
    %v560 = vld [vmem:[#allocation2 + $0x40] sm:$0xff]
    %v561 = vld [vmem:[#allocation2 + $0x48] sm:$0xff]
    %v562 = vld [vmem:[#allocation2 + $0x50] sm:$0xff]
    %v563 = vld [vmem:[#allocation2 + $0x58] sm:$0xff]
    %v564 = vld [vmem:[#allocation2 + $0x60] sm:$0xff]
    %v565 = vld [vmem:[#allocation2 + $0x68] sm:$0xff]
    %v566 = vld [vmem:[#allocation2 + $0x70] sm:$0xff]
    %v567 = vld [vmem:[#allocation2 + $0x78] sm:$0xff]
    %v568 = vld [vmem:[#allocation2 + $0x80] sm:$0xff]
    %v569 = vld [vmem:[#allocation2 + $0x88] sm:$0xff]
    %v570 = vld [vmem:[#allocation2 + $0x90] sm:$0xff]
    %v571 = vld [vmem:[#allocation2 + $0x98] sm:$0xff]
    %v572 = vld [vmem:[#allocation2 + $0xa0] sm:$0xff]
    %v573 = vld [vmem:[#allocation2 + $0xa8] sm:$0xff]
    %v574 = vld [vmem:[#allocation2 + $0xb0] sm:$0xff]
    %v575 = vld [vmem:[#allocation2 + $0xb8] sm:$0xff]
    %v576 = vld [vmem:[#allocation2 + $0xc0] sm:$0xff]
    %v577 = vld [vmem:[#allocation2 + $0xc8] sm:$0xff]
    %v578 = vld [vmem:[#allocation2 + $0xd0] sm:$0xff]
    %v579 = vld [vmem:[#allocation2 + $0xd8] sm:$0xff]
    %v580 = vld [vmem:[#allocation2 + $0xe0] sm:$0xff]
    %v581 = vld [vmem:[#allocation2 + $0xe8] sm:$0xff]
    %v582 = vld [vmem:[#allocation2 + $0xf0] sm:$0xff]
    %v583 = vld [vmem:[#allocation2 + $0xf8] sm:$0xff]
    %s584 = scalar_lea.vmem [#allocation9], 4
    %v585 = vld [vmem:[%s584] sm:$0x3]
    %v587 = vlaneseq
    %v588 = vshrl.u32 %v587, 7
    %v589 = vsub.s32 0, %v588
    %v590 = vrot.slane %v585, %v589
    %v591 = vlaneseq
    %v592 = vshrl.u32 %v591, 7
    %v593 = vsub.s32 1, %v592
    %v594 = vrot.slane %v585, %v593
    %597 = vmatprep.subr.bf16.mxu0 %v553
    %598 = vmatpush1.bf16.msra.mxu0 %v552
    %599 = vmatprep.subr.bf16.mxu0 %v555
    %600 = vmatpush1.bf16.msra.mxu0 %v554
    %601 = vmatprep.subr.bf16.mxu0 %v557
    %602 = vmatpush1.bf16.msra.mxu0 %v556
    %603 = vmatprep.subr.bf16.mxu0 %v559
    %604 = vmatpush1.bf16.msra.mxu0 %v558
    %605 = vmatprep.subr.bf16.mxu0 %v561
    %606 = vmatpush1.bf16.msra.mxu0 %v560
    %607 = vmatprep.subr.bf16.mxu0 %v563
    %608 = vmatpush1.bf16.msra.mxu0 %v562
    %609 = vmatprep.subr.bf16.mxu0 %v565
    %610 = vmatpush1.bf16.msra.mxu0 %v564
    %611 = vmatprep.subr.bf16.mxu0 %v567
    %612 = vmatpush1.bf16.msra.mxu0 %v566
    %613 = vmatprep.subr.bf16.mxu0 %v569
    %614 = vmatpush1.bf16.msra.mxu0 %v568
    %615 = vmatprep.subr.bf16.mxu0 %v571
    %616 = vmatpush1.bf16.msra.mxu0 %v570
    %617 = vmatprep.subr.bf16.mxu0 %v573
    %618 = vmatpush1.bf16.msra.mxu0 %v572
    %619 = vmatprep.subr.bf16.mxu0 %v575
    %620 = vmatpush1.bf16.msra.mxu0 %v574
    %621 = vmatprep.subr.bf16.mxu0 %v577
    %622 = vmatpush1.bf16.msra.mxu0 %v576
    %623 = vmatprep.subr.bf16.mxu0 %v579
    %624 = vmatpush1.bf16.msra.mxu0 %v578
    %625 = vmatprep.subr.bf16.mxu0 %v581
    %626 = vmatpush1.bf16.msra.mxu0 %v580
    %627 = vmatprep.subr.bf16.mxu0 %v583
    %628 = vmatpush1.bf16.msra.mxu0 %v582
    %629 = vmatprep.mubr.bf16.mxu0 %v551
    %630 = vmatmul.mubr.bf16.gmra.mrb[0].mxu0 %v550
    %v631 = vpop.f32.mrb[0].mxu0
    %v632 = vadd.f32 %v590, %v631
    %v633 = vpop.f32.mrb[0].mxu0
    %v634 = vadd.f32 %v594, %v633
    %v635 = vpop.f32.mrb[0].mxu0
    %v636 = vpop.f32.mrb[0].mxu0
    %637 = vdwg.mxu0
    %v638 = vmax.f32 %v632, 0.0
    %v639 = vmax.f32 %v634, 0.0
    %v640 = vadd.f32 %v638, %v511
    %v641 = vadd.f32 %v639, %v512
    %s642 = sshll.u32 %s253, 4
    %643 = dma.done %s258, %s642
    %s644 = scalar_lea.hbm %s2, 16384
    %s646 = sshll.u32 1, 14
    %s647 = sxor.u32 4294967295, %s646
    %s649 = sadd.s32 2, %s80
    %s651 = sshll.u32 7, 26
    %s652 = sxor.u32 4294967295, %s651
    %s653 = sand.u32 0, %s652
    %s654 = sshll.u32 %s649, 26
    %s655 = sor.u32 %s653, %s654
    %s656 = sshll.u32 [#allocation2], 4
    %s657 = int_to_ptr.vmem [resolvable:$true] %s656
    %660 = sst [smem:[#allocation22]] 256
    %s661 = scalar_lea.smem [#allocation22], 1
    %662 = sst [smem:[%s661]] 256
    %s663 = scalar_lea.smem [#allocation22], 2
    %664 = sst [smem:[%s663]] 2
    %s665 = scalar_lea.smem [#allocation22], 3
    %666 = sst [smem:[%s665]] 64
    %s667 = scalar_lea.smem [#allocation22], 4
    %668 = sst [smem:[%s667]] 128
    %s669 = scalar_lea.smem [#allocation22], 5
    %670 = sst [smem:[%s669]] 2
    %s671 = scalar_lea.smem [#allocation22], 6
    %672 = sst [smem:[%s671]] 128
    %s673 = scalar_lea.smem [#allocation22], 7
    %674 = sst [smem:[%s673]] 64
    %s675 = scalar_lea.smem [#allocation22], 8
    %676 = sst [smem:[%s675]] 4
    %678 = dma.general %s644, 4096, %s657, [#allocation3], [#allocation21], [#allocation22], %s655, 0
    %v679 = vpack.c.bf16 %v640, %v640
    %v680 = vpack.c.bf16 %v641, %v641
    %v681 = vld [vmem:[%s257] sm:$0xff]
    %v682 = vld [vmem:[%s257 + $0x8] sm:$0xff]
    %v683 = vld [vmem:[%s257 + $0x10] sm:$0xff]
    %v684 = vld [vmem:[%s257 + $0x18] sm:$0xff]
    %v685 = vld [vmem:[%s257 + $0x20] sm:$0xff]
    %v686 = vld [vmem:[%s257 + $0x28] sm:$0xff]
    %v687 = vld [vmem:[%s257 + $0x30] sm:$0xff]
    %v688 = vld [vmem:[%s257 + $0x38] sm:$0xff]
    %v689 = vld [vmem:[%s257 + $0x40] sm:$0xff]
    %v690 = vld [vmem:[%s257 + $0x48] sm:$0xff]
    %v691 = vld [vmem:[%s257 + $0x50] sm:$0xff]
    %v692 = vld [vmem:[%s257 + $0x58] sm:$0xff]
    %v693 = vld [vmem:[%s257 + $0x60] sm:$0xff]
    %v694 = vld [vmem:[%s257 + $0x68] sm:$0xff]
    %v695 = vld [vmem:[%s257 + $0x70] sm:$0xff]
    %v696 = vld [vmem:[%s257 + $0x78] sm:$0xff]
    %v697 = vld [vmem:[%s257 + $0x80] sm:$0xff]
    %v698 = vld [vmem:[%s257 + $0x88] sm:$0xff]
    %v699 = vld [vmem:[%s257 + $0x90] sm:$0xff]
    %v700 = vld [vmem:[%s257 + $0x98] sm:$0xff]
    %v701 = vld [vmem:[%s257 + $0xa0] sm:$0xff]
    %v702 = vld [vmem:[%s257 + $0xa8] sm:$0xff]
    %v703 = vld [vmem:[%s257 + $0xb0] sm:$0xff]
    %v704 = vld [vmem:[%s257 + $0xb8] sm:$0xff]
    %v705 = vld [vmem:[%s257 + $0xc0] sm:$0xff]
    %v706 = vld [vmem:[%s257 + $0xc8] sm:$0xff]
    %v707 = vld [vmem:[%s257 + $0xd0] sm:$0xff]
    %v708 = vld [vmem:[%s257 + $0xd8] sm:$0xff]
    %v709 = vld [vmem:[%s257 + $0xe0] sm:$0xff]
    %v710 = vld [vmem:[%s257 + $0xe8] sm:$0xff]
    %v711 = vld [vmem:[%s257 + $0xf0] sm:$0xff]
    %v712 = vld [vmem:[%s257 + $0xf8] sm:$0xff]
    %s713 = scalar_lea.vmem [#allocation9], 6
    %v714 = vld [vmem:[%s713] sm:$0x3]
    %v716 = vlaneseq
    %v717 = vshrl.u32 %v716, 7
    %v718 = vsub.s32 0, %v717
    %v719 = vrot.slane %v714, %v718
    %v720 = vlaneseq
    %v721 = vshrl.u32 %v720, 7
    %v722 = vsub.s32 1, %v721
    %v723 = vrot.slane %v714, %v722
    %726 = vmatprep.subr.bf16.mxu0 %v682
    %727 = vmatpush1.bf16.msra.mxu0 %v681
    %728 = vmatprep.subr.bf16.mxu0 %v684
    %729 = vmatpush1.bf16.msra.mxu0 %v683
    %730 = vmatprep.subr.bf16.mxu0 %v686
    %731 = vmatpush1.bf16.msra.mxu0 %v685
    %732 = vmatprep.subr.bf16.mxu0 %v688
    %733 = vmatpush1.bf16.msra.mxu0 %v687
    %734 = vmatprep.subr.bf16.mxu0 %v690
    %735 = vmatpush1.bf16.msra.mxu0 %v689
    %736 = vmatprep.subr.bf16.mxu0 %v692
    %737 = vmatpush1.bf16.msra.mxu0 %v691
    %738 = vmatprep.subr.bf16.mxu0 %v694
    %739 = vmatpush1.bf16.msra.mxu0 %v693
    %740 = vmatprep.subr.bf16.mxu0 %v696
    %741 = vmatpush1.bf16.msra.mxu0 %v695
    %742 = vmatprep.subr.bf16.mxu0 %v698
    %743 = vmatpush1.bf16.msra.mxu0 %v697
    %744 = vmatprep.subr.bf16.mxu0 %v700
    %745 = vmatpush1.bf16.msra.mxu0 %v699
    %746 = vmatprep.subr.bf16.mxu0 %v702
    %747 = vmatpush1.bf16.msra.mxu0 %v701
    %748 = vmatprep.subr.bf16.mxu0 %v704
    %749 = vmatpush1.bf16.msra.mxu0 %v703
    %750 = vmatprep.subr.bf16.mxu0 %v706
    %751 = vmatpush1.bf16.msra.mxu0 %v705
    %752 = vmatprep.subr.bf16.mxu0 %v708
    %753 = vmatpush1.bf16.msra.mxu0 %v707
    %754 = vmatprep.subr.bf16.mxu0 %v710
    %755 = vmatpush1.bf16.msra.mxu0 %v709
    %756 = vmatprep.subr.bf16.mxu0 %v712
    %757 = vmatpush1.bf16.msra.mxu0 %v711
    %758 = vmatprep.mubr.bf16.mxu0 %v680
    %759 = vmatmul.mubr.bf16.gmra.mrb[0].mxu0 %v679
    %v760 = vpop.f32.mrb[0].mxu0
    %v761 = vadd.f32 %v719, %v760
    %v762 = vpop.f32.mrb[0].mxu0
    %v763 = vadd.f32 %v723, %v762
    %v764 = vpop.f32.mrb[0].mxu0
    %v765 = vpop.f32.mrb[0].mxu0
    %766 = vdwg.mxu0
    %v767 = vmax.f32 %v761, 0.0
    %v768 = vmax.f32 %v763, 0.0
    %v769 = vadd.f32 %v767, %v640
    %v770 = vadd.f32 %v768, %v641
    %s771 = sshll.u32 %s253, 4
    %772 = dma.done [#allocation3], %s771
    %s773 = scalar_lea.hbm %s2, 20480
    %s775 = sshll.u32 1, 14
    %s776 = sxor.u32 4294967295, %s775
    %s778 = sadd.s32 2, %s80
    %s780 = sshll.u32 7, 26
    %s781 = sxor.u32 4294967295, %s780
    %s782 = sand.u32 0, %s781
    %s783 = sshll.u32 %s778, 26
    %s784 = sor.u32 %s782, %s783
    %s785 = sshll.u32 %s257, 4
    %s786 = int_to_ptr.vmem [resolvable:$true] %s785
    %789 = sst [smem:[#allocation24]] 256
    %s790 = scalar_lea.smem [#allocation24], 1
    %791 = sst [smem:[%s790]] 256
    %s792 = scalar_lea.smem [#allocation24], 2
    %793 = sst [smem:[%s792]] 2
    %s794 = scalar_lea.smem [#allocation24], 3
    %795 = sst [smem:[%s794]] 64
    %s796 = scalar_lea.smem [#allocation24], 4
    %797 = sst [smem:[%s796]] 128
    %s798 = scalar_lea.smem [#allocation24], 5
    %799 = sst [smem:[%s798]] 2
    %s800 = scalar_lea.smem [#allocation24], 6
    %801 = sst [smem:[%s800]] 128
    %s802 = scalar_lea.smem [#allocation24], 7
    %803 = sst [smem:[%s802]] 64
    %s804 = scalar_lea.smem [#allocation24], 8
    %805 = sst [smem:[%s804]] 4
    %807 = dma.general %s773, 4096, %s786, %s258, [#allocation23], [#allocation24], %s784, 0
    %v808 = vpack.c.bf16 %v769, %v769
    %v809 = vpack.c.bf16 %v770, %v770
    %v810 = vld [vmem:[#allocation2] sm:$0xff]
    %v811 = vld [vmem:[#allocation2 + $0x8] sm:$0xff]
    %v812 = vld [vmem:[#allocation2 + $0x10] sm:$0xff]
    %v813 = vld [vmem:[#allocation2 + $0x18] sm:$0xff]
    %v814 = vld [vmem:[#allocation2 + $0x20] sm:$0xff]
    %v815 = vld [vmem:[#allocation2 + $0x28] sm:$0xff]
    %v816 = vld [vmem:[#allocation2 + $0x30] sm:$0xff]
    %v817 = vld [vmem:[#allocation2 + $0x38] sm:$0xff]
    %v818 = vld [vmem:[#allocation2 + $0x40] sm:$0xff]
    %v819 = vld [vmem:[#allocation2 + $0x48] sm:$0xff]
    %v820 = vld [vmem:[#allocation2 + $0x50] sm:$0xff]
    %v821 = vld [vmem:[#allocation2 + $0x58] sm:$0xff]
    %v822 = vld [vmem:[#allocation2 + $0x60] sm:$0xff]
    %v823 = vld [vmem:[#allocation2 + $0x68] sm:$0xff]
    %v824 = vld [vmem:[#allocation2 + $0x70] sm:$0xff]
    %v825 = vld [vmem:[#allocation2 + $0x78] sm:$0xff]
    %v826 = vld [vmem:[#allocation2 + $0x80] sm:$0xff]
    %v827 = vld [vmem:[#allocation2 + $0x88] sm:$0xff]
    %v828 = vld [vmem:[#allocation2 + $0x90] sm:$0xff]
    %v829 = vld [vmem:[#allocation2 + $0x98] sm:$0xff]
    %v830 = vld [vmem:[#allocation2 + $0xa0] sm:$0xff]
    %v831 = vld [vmem:[#allocation2 + $0xa8] sm:$0xff]
    %v832 = vld [vmem:[#allocation2 + $0xb0] sm:$0xff]
    %v833 = vld [vmem:[#allocation2 + $0xb8] sm:$0xff]
    %v834 = vld [vmem:[#allocation2 + $0xc0] sm:$0xff]
    %v835 = vld [vmem:[#allocation2 + $0xc8] sm:$0xff]
    %v836 = vld [vmem:[#allocation2 + $0xd0] sm:$0xff]
    %v837 = vld [vmem:[#allocation2 + $0xd8] sm:$0xff]
    %v838 = vld [vmem:[#allocation2 + $0xe0] sm:$0xff]
    %v839 = vld [vmem:[#allocation2 + $0xe8] sm:$0xff]
    %v840 = vld [vmem:[#allocation2 + $0xf0] sm:$0xff]
    %v841 = vld [vmem:[#allocation2 + $0xf8] sm:$0xff]
    %s842 = scalar_lea.vmem [#allocation9], 8
    %v843 = vld [vmem:[%s842] sm:$0x3]
    %v845 = vlaneseq
    %v846 = vshrl.u32 %v845, 7
    %v847 = vsub.s32 0, %v846
    %v848 = vrot.slane %v843, %v847
    %v849 = vlaneseq
    %v850 = vshrl.u32 %v849, 7
    %v851 = vsub.s32 1, %v850
    %v852 = vrot.slane %v843, %v851
    %855 = vmatprep.subr.bf16.mxu0 %v811
    %856 = vmatpush1.bf16.msra.mxu0 %v810
    %857 = vmatprep.subr.bf16.mxu0 %v813
    %858 = vmatpush1.bf16.msra.mxu0 %v812
    %859 = vmatprep.subr.bf16.mxu0 %v815
    %860 = vmatpush1.bf16.msra.mxu0 %v814
    %861 = vmatprep.subr.bf16.mxu0 %v817
    %862 = vmatpush1.bf16.msra.mxu0 %v816
    %863 = vmatprep.subr.bf16.mxu0 %v819
    %864 = vmatpush1.bf16.msra.mxu0 %v818
    %865 = vmatprep.subr.bf16.mxu0 %v821
    %866 = vmatpush1.bf16.msra.mxu0 %v820
    %867 = vmatprep.subr.bf16.mxu0 %v823
    %868 = vmatpush1.bf16.msra.mxu0 %v822
    %869 = vmatprep.subr.bf16.mxu0 %v825
    %870 = vmatpush1.bf16.msra.mxu0 %v824
    %871 = vmatprep.subr.bf16.mxu0 %v827
    %872 = vmatpush1.bf16.msra.mxu0 %v826
    %873 = vmatprep.subr.bf16.mxu0 %v829
    %874 = vmatpush1.bf16.msra.mxu0 %v828
    %875 = vmatprep.subr.bf16.mxu0 %v831
    %876 = vmatpush1.bf16.msra.mxu0 %v830
    %877 = vmatprep.subr.bf16.mxu0 %v833
    %878 = vmatpush1.bf16.msra.mxu0 %v832
    %879 = vmatprep.subr.bf16.mxu0 %v835
    %880 = vmatpush1.bf16.msra.mxu0 %v834
    %881 = vmatprep.subr.bf16.mxu0 %v837
    %882 = vmatpush1.bf16.msra.mxu0 %v836
    %883 = vmatprep.subr.bf16.mxu0 %v839
    %884 = vmatpush1.bf16.msra.mxu0 %v838
    %885 = vmatprep.subr.bf16.mxu0 %v841
    %886 = vmatpush1.bf16.msra.mxu0 %v840
    %887 = vmatprep.mubr.bf16.mxu0 %v809
    %888 = vmatmul.mubr.bf16.gmra.mrb[0].mxu0 %v808
    %v889 = vpop.f32.mrb[0].mxu0
    %v890 = vadd.f32 %v848, %v889
    %v891 = vpop.f32.mrb[0].mxu0
    %v892 = vadd.f32 %v852, %v891
    %v893 = vpop.f32.mrb[0].mxu0
    %v894 = vpop.f32.mrb[0].mxu0
    %895 = vdwg.mxu0
    %v896 = vmax.f32 %v890, 0.0
    %v897 = vmax.f32 %v892, 0.0
    %v898 = vadd.f32 %v896, %v769
    %v899 = vadd.f32 %v897, %v770
    %s900 = sshll.u32 %s253, 4
    %901 = dma.done %s258, %s900
    %s902 = scalar_lea.hbm %s2, 24576
    %s904 = sshll.u32 1, 14
    %s905 = sxor.u32 4294967295, %s904
    %s907 = sadd.s32 2, %s80
    %s909 = sshll.u32 7, 26
    %s910 = sxor.u32 4294967295, %s909
    %s911 = sand.u32 0, %s910
    %s912 = sshll.u32 %s907, 26
    %s913 = sor.u32 %s911, %s912
    %s914 = sshll.u32 [#allocation2], 4
    %s915 = int_to_ptr.vmem [resolvable:$true] %s914
    %918 = sst [smem:[#allocation26]] 256
    %s919 = scalar_lea.smem [#allocation26], 1
    %920 = sst [smem:[%s919]] 256
    %s921 = scalar_lea.smem [#allocation26], 2
    %922 = sst [smem:[%s921]] 2
    %s923 = scalar_lea.smem [#allocation26], 3
    %924 = sst [smem:[%s923]] 64
    %s925 = scalar_lea.smem [#allocation26], 4
    %926 = sst [smem:[%s925]] 128
    %s927 = scalar_lea.smem [#allocation26], 5
    %928 = sst [smem:[%s927]] 2
    %s929 = scalar_lea.smem [#allocation26], 6
    %930 = sst [smem:[%s929]] 128
    %s931 = scalar_lea.smem [#allocation26], 7
    %932 = sst [smem:[%s931]] 64
    %s933 = scalar_lea.smem [#allocation26], 8
    %934 = sst [smem:[%s933]] 4
    %936 = dma.general %s902, 4096, %s915, [#allocation3], [#allocation25], [#allocation26], %s913, 0
    %v937 = vpack.c.bf16 %v898, %v898
    %v938 = vpack.c.bf16 %v899, %v899
    %v939 = vld [vmem:[%s257] sm:$0xff]
    %v940 = vld [vmem:[%s257 + $0x8] sm:$0xff]
    %v941 = vld [vmem:[%s257 + $0x10] sm:$0xff]
    %v942 = vld [vmem:[%s257 + $0x18] sm:$0xff]
    %v943 = vld [vmem:[%s257 + $0x20] sm:$0xff]
    %v944 = vld [vmem:[%s257 + $0x28] sm:$0xff]
    %v945 = vld [vmem:[%s257 + $0x30] sm:$0xff]
    %v946 = vld [vmem:[%s257 + $0x38] sm:$0xff]
    %v947 = vld [vmem:[%s257 + $0x40] sm:$0xff]
    %v948 = vld [vmem:[%s257 + $0x48] sm:$0xff]
    %v949 = vld [vmem:[%s257 + $0x50] sm:$0xff]
    %v950 = vld [vmem:[%s257 + $0x58] sm:$0xff]
    %v951 = vld [vmem:[%s257 + $0x60] sm:$0xff]
    %v952 = vld [vmem:[%s257 + $0x68] sm:$0xff]
    %v953 = vld [vmem:[%s257 + $0x70] sm:$0xff]
    %v954 = vld [vmem:[%s257 + $0x78] sm:$0xff]
    %v955 = vld [vmem:[%s257 + $0x80] sm:$0xff]
    %v956 = vld [vmem:[%s257 + $0x88] sm:$0xff]
    %v957 = vld [vmem:[%s257 + $0x90] sm:$0xff]
    %v958 = vld [vmem:[%s257 + $0x98] sm:$0xff]
    %v959 = vld [vmem:[%s257 + $0xa0] sm:$0xff]
    %v960 = vld [vmem:[%s257 + $0xa8] sm:$0xff]
    %v961 = vld [vmem:[%s257 + $0xb0] sm:$0xff]
    %v962 = vld [vmem:[%s257 + $0xb8] sm:$0xff]
    %v963 = vld [vmem:[%s257 + $0xc0] sm:$0xff]
    %v964 = vld [vmem:[%s257 + $0xc8] sm:$0xff]
    %v965 = vld [vmem:[%s257 + $0xd0] sm:$0xff]
    %v966 = vld [vmem:[%s257 + $0xd8] sm:$0xff]
    %v967 = vld [vmem:[%s257 + $0xe0] sm:$0xff]
    %v968 = vld [vmem:[%s257 + $0xe8] sm:$0xff]
    %v969 = vld [vmem:[%s257 + $0xf0] sm:$0xff]
    %v970 = vld [vmem:[%s257 + $0xf8] sm:$0xff]
    %s971 = scalar_lea.vmem [#allocation9], 10
    %v972 = vld [vmem:[%s971] sm:$0x3]
    %v974 = vlaneseq
    %v975 = vshrl.u32 %v974, 7
    %v976 = vsub.s32 0, %v975
    %v977 = vrot.slane %v972, %v976
    %v978 = vlaneseq
    %v979 = vshrl.u32 %v978, 7
    %v980 = vsub.s32 1, %v979
    %v981 = vrot.slane %v972, %v980
    %984 = vmatprep.subr.bf16.mxu0 %v940
    %985 = vmatpush1.bf16.msra.mxu0 %v939
    %986 = vmatprep.subr.bf16.mxu0 %v942
    %987 = vmatpush1.bf16.msra.mxu0 %v941
    %988 = vmatprep.subr.bf16.mxu0 %v944
    %989 = vmatpush1.bf16.msra.mxu0 %v943
    %990 = vmatprep.subr.bf16.mxu0 %v946
    %991 = vmatpush1.bf16.msra.mxu0 %v945
    %992 = vmatprep.subr.bf16.mxu0 %v948
    %993 = vmatpush1.bf16.msra.mxu0 %v947
    %994 = vmatprep.subr.bf16.mxu0 %v950
    %995 = vmatpush1.bf16.msra.mxu0 %v949
    %996 = vmatprep.subr.bf16.mxu0 %v952
    %997 = vmatpush1.bf16.msra.mxu0 %v951
    %998 = vmatprep.subr.bf16.mxu0 %v954
    %999 = vmatpush1.bf16.msra.mxu0 %v953
    %1000 = vmatprep.subr.bf16.mxu0 %v956
    %1001 = vmatpush1.bf16.msra.mxu0 %v955
    %1002 = vmatprep.subr.bf16.mxu0 %v958
    %1003 = vmatpush1.bf16.msra.mxu0 %v957
    %1004 = vmatprep.subr.bf16.mxu0 %v960
    %1005 = vmatpush1.bf16.msra.mxu0 %v959
    %1006 = vmatprep.subr.bf16.mxu0 %v962
    %1007 = vmatpush1.bf16.msra.mxu0 %v961
    %1008 = vmatprep.subr.bf16.mxu0 %v964
    %1009 = vmatpush1.bf16.msra.mxu0 %v963
    %1010 = vmatprep.subr.bf16.mxu0 %v966
    %1011 = vmatpush1.bf16.msra.mxu0 %v965
    %1012 = vmatprep.subr.bf16.mxu0 %v968
    %1013 = vmatpush1.bf16.msra.mxu0 %v967
    %1014 = vmatprep.subr.bf16.mxu0 %v970
    %1015 = vmatpush1.bf16.msra.mxu0 %v969
    %1016 = vmatprep.mubr.bf16.mxu0 %v938
    %1017 = vmatmul.mubr.bf16.gmra.mrb[0].mxu0 %v937
    %v1018 = vpop.f32.mrb[0].mxu0
    %v1019 = vadd.f32 %v977, %v1018
    %v1020 = vpop.f32.mrb[0].mxu0
    %v1021 = vadd.f32 %v981, %v1020
    %v1022 = vpop.f32.mrb[0].mxu0
    %v1023 = vpop.f32.mrb[0].mxu0
    %1024 = vdwg.mxu0
    %v1025 = vmax.f32 %v1019, 0.0
    %v1026 = vmax.f32 %v1021, 0.0
    %v1027 = vadd.f32 %v1025, %v898
    %v1028 = vadd.f32 %v1026, %v899
    %s1029 = sshll.u32 %s253, 4
    %1030 = dma.done [#allocation3], %s1029
    %v1031 = vpack.c.bf16 %v1027, %v1027
    %v1032 = vpack.c.bf16 %v1028, %v1028
    %v1033 = vld [vmem:[#allocation2] sm:$0xff]
    %v1034 = vld [vmem:[#allocation2 + $0x8] sm:$0xff]
    %v1035 = vld [vmem:[#allocation2 + $0x10] sm:$0xff]
    %v1036 = vld [vmem:[#allocation2 + $0x18] sm:$0xff]
    %v1037 = vld [vmem:[#allocation2 + $0x20] sm:$0xff]
    %v1038 = vld [vmem:[#allocation2 + $0x28] sm:$0xff]
    %v1039 = vld [vmem:[#allocation2 + $0x30] sm:$0xff]
    %v1040 = vld [vmem:[#allocation2 + $0x38] sm:$0xff]
    %v1041 = vld [vmem:[#allocation2 + $0x40] sm:$0xff]
    %v1042 = vld [vmem:[#allocation2 + $0x48] sm:$0xff]
    %v1043 = vld [vmem:[#allocation2 + $0x50] sm:$0xff]
    %v1044 = vld [vmem:[#allocation2 + $0x58] sm:$0xff]
    %v1045 = vld [vmem:[#allocation2 + $0x60] sm:$0xff]
    %v1046 = vld [vmem:[#allocation2 + $0x68] sm:$0xff]
    %v1047 = vld [vmem:[#allocation2 + $0x70] sm:$0xff]
    %v1048 = vld [vmem:[#allocation2 + $0x78] sm:$0xff]
    %v1049 = vld [vmem:[#allocation2 + $0x80] sm:$0xff]
    %v1050 = vld [vmem:[#allocation2 + $0x88] sm:$0xff]
    %v1051 = vld [vmem:[#allocation2 + $0x90] sm:$0xff]
    %v1052 = vld [vmem:[#allocation2 + $0x98] sm:$0xff]
    %v1053 = vld [vmem:[#allocation2 + $0xa0] sm:$0xff]
    %v1054 = vld [vmem:[#allocation2 + $0xa8] sm:$0xff]
    %v1055 = vld [vmem:[#allocation2 + $0xb0] sm:$0xff]
    %v1056 = vld [vmem:[#allocation2 + $0xb8] sm:$0xff]
    %v1057 = vld [vmem:[#allocation2 + $0xc0] sm:$0xff]
    %v1058 = vld [vmem:[#allocation2 + $0xc8] sm:$0xff]
    %v1059 = vld [vmem:[#allocation2 + $0xd0] sm:$0xff]
    %v1060 = vld [vmem:[#allocation2 + $0xd8] sm:$0xff]
    %v1061 = vld [vmem:[#allocation2 + $0xe0] sm:$0xff]
    %v1062 = vld [vmem:[#allocation2 + $0xe8] sm:$0xff]
    %v1063 = vld [vmem:[#allocation2 + $0xf0] sm:$0xff]
    %v1064 = vld [vmem:[#allocation2 + $0xf8] sm:$0xff]
    %s1065 = scalar_lea.vmem [#allocation9], 12
    %v1066 = vld [vmem:[%s1065] sm:$0x3]
    %v1068 = vlaneseq
    %v1069 = vshrl.u32 %v1068, 7
    %v1070 = vsub.s32 0, %v1069
    %v1071 = vrot.slane %v1066, %v1070
    %v1072 = vlaneseq
    %v1073 = vshrl.u32 %v1072, 7
    %v1074 = vsub.s32 1, %v1073
    %v1075 = vrot.slane %v1066, %v1074
    %1078 = vmatprep.subr.bf16.mxu0 %v1034
    %1079 = vmatpush1.bf16.msra.mxu0 %v1033
    %1080 = vmatprep.subr.bf16.mxu0 %v1036
    %1081 = vmatpush1.bf16.msra.mxu0 %v1035
    %1082 = vmatprep.subr.bf16.mxu0 %v1038
    %1083 = vmatpush1.bf16.msra.mxu0 %v1037
    %1084 = vmatprep.subr.bf16.mxu0 %v1040
    %1085 = vmatpush1.bf16.msra.mxu0 %v1039
    %1086 = vmatprep.subr.bf16.mxu0 %v1042
    %1087 = vmatpush1.bf16.msra.mxu0 %v1041
    %1088 = vmatprep.subr.bf16.mxu0 %v1044
    %1089 = vmatpush1.bf16.msra.mxu0 %v1043
    %1090 = vmatprep.subr.bf16.mxu0 %v1046
    %1091 = vmatpush1.bf16.msra.mxu0 %v1045
    %1092 = vmatprep.subr.bf16.mxu0 %v1048
    %1093 = vmatpush1.bf16.msra.mxu0 %v1047
    %1094 = vmatprep.subr.bf16.mxu0 %v1050
    %1095 = vmatpush1.bf16.msra.mxu0 %v1049
    %1096 = vmatprep.subr.bf16.mxu0 %v1052
    %1097 = vmatpush1.bf16.msra.mxu0 %v1051
    %1098 = vmatprep.subr.bf16.mxu0 %v1054
    %1099 = vmatpush1.bf16.msra.mxu0 %v1053
    %1100 = vmatprep.subr.bf16.mxu0 %v1056
    %1101 = vmatpush1.bf16.msra.mxu0 %v1055
    %1102 = vmatprep.subr.bf16.mxu0 %v1058
    %1103 = vmatpush1.bf16.msra.mxu0 %v1057
    %1104 = vmatprep.subr.bf16.mxu0 %v1060
    %1105 = vmatpush1.bf16.msra.mxu0 %v1059
    %1106 = vmatprep.subr.bf16.mxu0 %v1062
    %1107 = vmatpush1.bf16.msra.mxu0 %v1061
    %1108 = vmatprep.subr.bf16.mxu0 %v1064
    %1109 = vmatpush1.bf16.msra.mxu0 %v1063
    %1110 = vmatprep.mubr.bf16.mxu0 %v1032
    %1111 = vmatmul.mubr.bf16.gmra.mrb[0].mxu0 %v1031
    %v1112 = vpop.f32.mrb[0].mxu0
    %v1113 = vadd.f32 %v1071, %v1112
    %v1114 = vpop.f32.mrb[0].mxu0
    %v1115 = vadd.f32 %v1075, %v1114
    %v1116 = vpop.f32.mrb[0].mxu0
    %v1117 = vpop.f32.mrb[0].mxu0
    %1118 = vdwg.mxu0
    %v1119 = vmax.f32 %v1113, 0.0
    %v1120 = vmax.f32 %v1115, 0.0
    %v1121 = vadd.f32 %v1119, %v1027
    %v1122 = vadd.f32 %v1120, %v1028
    %v1123 = vpack.c.bf16 %v1121, %v1121
    %v1124 = vpack.c.bf16 %v1122, %v1122
    %v1125 = vld [vmem:[#allocation10] sm:$0xf]
    %v1126 = vld [vmem:[#allocation10 + $0x4] sm:$0xf]
    %v1127 = vld [vmem:[#allocation10 + $0x8] sm:$0xf]
    %v1128 = vld [vmem:[#allocation10 + $0xc] sm:$0xf]
    %v1129 = vld [vmem:[#allocation10 + $0x10] sm:$0xf]
    %v1130 = vld [vmem:[#allocation10 + $0x14] sm:$0xf]
    %v1131 = vld [vmem:[#allocation10 + $0x18] sm:$0xf]
    %v1132 = vld [vmem:[#allocation10 + $0x1c] sm:$0xf]
    %v1133 = vld [vmem:[#allocation10 + $0x20] sm:$0xf]
    %v1134 = vld [vmem:[#allocation10 + $0x24] sm:$0xf]
    %v1135 = vld [vmem:[#allocation10 + $0x28] sm:$0xf]
    %v1136 = vld [vmem:[#allocation10 + $0x2c] sm:$0xf]
    %v1137 = vld [vmem:[#allocation10 + $0x30] sm:$0xf]
    %v1138 = vld [vmem:[#allocation10 + $0x34] sm:$0xf]
    %v1139 = vld [vmem:[#allocation10 + $0x38] sm:$0xf]
    %v1140 = vld [vmem:[#allocation10 + $0x3c] sm:$0xf]
    %v1141 = vld [vmem:[#allocation10 + $0x40] sm:$0xf]
    %v1142 = vld [vmem:[#allocation10 + $0x44] sm:$0xf]
    %v1143 = vld [vmem:[#allocation10 + $0x48] sm:$0xf]
    %v1144 = vld [vmem:[#allocation10 + $0x4c] sm:$0xf]
    %v1145 = vld [vmem:[#allocation10 + $0x50] sm:$0xf]
    %v1146 = vld [vmem:[#allocation10 + $0x54] sm:$0xf]
    %v1147 = vld [vmem:[#allocation10 + $0x58] sm:$0xf]
    %v1148 = vld [vmem:[#allocation10 + $0x5c] sm:$0xf]
    %v1149 = vld [vmem:[#allocation10 + $0x60] sm:$0xf]
    %v1150 = vld [vmem:[#allocation10 + $0x64] sm:$0xf]
    %v1151 = vld [vmem:[#allocation10 + $0x68] sm:$0xf]
    %v1152 = vld [vmem:[#allocation10 + $0x6c] sm:$0xf]
    %v1153 = vld [vmem:[#allocation10 + $0x70] sm:$0xf]
    %v1154 = vld [vmem:[#allocation10 + $0x74] sm:$0xf]
    %v1155 = vld [vmem:[#allocation10 + $0x78] sm:$0xf]
    %v1156 = vld [vmem:[#allocation10 + $0x7c] sm:$0xf]
    %v1157 = vld [vmem:[%s5] sm:$0x1]
    %v1159 = vlaneseq
    %v1160 = vshrl.u32 %v1159, 7
    %v1161 = vsub.s32 0, %v1160
    %v1162 = vrot.slane %v1157, %v1161
    %v1196 = vunpack.c.l.b16 %v1125
    %v1197 = vunpack.c.l.b16 %v1126
    %v1198 = vunpack.c.l.b16 %v1127
    %v1199 = vunpack.c.l.b16 %v1128
    %v1200 = vunpack.c.l.b16 %v1129
    %v1201 = vunpack.c.l.b16 %v1130
    %v1202 = vunpack.c.l.b16 %v1131
    %v1203 = vunpack.c.l.b16 %v1132
    %v1204 = vunpack.c.l.b16 %v1133
    %v1205 = vunpack.c.l.b16 %v1134
    %v1206 = vunpack.c.l.b16 %v1135
    %v1207 = vunpack.c.l.b16 %v1136
    %v1208 = vunpack.c.l.b16 %v1137
    %v1209 = vunpack.c.l.b16 %v1138
    %v1210 = vunpack.c.l.b16 %v1139
    %v1211 = vunpack.c.l.b16 %v1140
    %v1212 = vunpack.c.l.b16 %v1141
    %v1213 = vunpack.c.l.b16 %v1142
    %v1214 = vunpack.c.l.b16 %v1143
    %v1215 = vunpack.c.l.b16 %v1144
    %v1216 = vunpack.c.l.b16 %v1145
    %v1217 = vunpack.c.l.b16 %v1146
    %v1218 = vunpack.c.l.b16 %v1147
    %v1219 = vunpack.c.l.b16 %v1148
    %v1220 = vunpack.c.l.b16 %v1149
    %v1221 = vunpack.c.l.b16 %v1150
    %v1222 = vunpack.c.l.b16 %v1151
    %v1223 = vunpack.c.l.b16 %v1152
    %v1224 = vunpack.c.l.b16 %v1153
    %v1225 = vunpack.c.l.b16 %v1154
    %v1226 = vunpack.c.l.b16 %v1155
    %v1227 = vunpack.c.l.b16 %v1156
    %v1228 = vpack.c.b16 %v1197, %v1196
    %v1229 = vpack.c.b16 %v1199, %v1198
    %v1230 = vpack.c.b16 %v1201, %v1200
    %v1231 = vpack.c.b16 %v1203, %v1202
    %v1232 = vpack.c.b16 %v1205, %v1204
    %v1233 = vpack.c.b16 %v1207, %v1206
    %v1234 = vpack.c.b16 %v1209, %v1208
    %v1235 = vpack.c.b16 %v1211, %v1210
    %v1236 = vpack.c.b16 %v1213, %v1212
    %v1237 = vpack.c.b16 %v1215, %v1214
    %v1238 = vpack.c.b16 %v1217, %v1216
    %v1239 = vpack.c.b16 %v1219, %v1218
    %v1240 = vpack.c.b16 %v1221, %v1220
    %v1241 = vpack.c.b16 %v1223, %v1222
    %v1242 = vpack.c.b16 %v1225, %v1224
    %v1243 = vpack.c.b16 %v1227, %v1226
    %1260 = vmatprep.subr.bf16.mxu0 0
    %1261 = vmatpush1.bf16.msra.mxu0 %v1228
    %1262 = vmatprep.subr.bf16.mxu0 0
    %1263 = vmatpush1.bf16.msra.mxu0 %v1229
    %1264 = vmatprep.subr.bf16.mxu0 0
    %1265 = vmatpush1.bf16.msra.mxu0 %v1230
    %1266 = vmatprep.subr.bf16.mxu0 0
    %1267 = vmatpush1.bf16.msra.mxu0 %v1231
    %1268 = vmatprep.subr.bf16.mxu0 0
    %1269 = vmatpush1.bf16.msra.mxu0 %v1232
    %1270 = vmatprep.subr.bf16.mxu0 0
    %1271 = vmatpush1.bf16.msra.mxu0 %v1233
    %1272 = vmatprep.subr.bf16.mxu0 0
    %1273 = vmatpush1.bf16.msra.mxu0 %v1234
    %1274 = vmatprep.subr.bf16.mxu0 0
    %1275 = vmatpush1.bf16.msra.mxu0 %v1235
    %1276 = vmatprep.subr.bf16.mxu0 0
    %1277 = vmatpush1.bf16.msra.mxu0 %v1236
    %1278 = vmatprep.subr.bf16.mxu0 0
    %1279 = vmatpush1.bf16.msra.mxu0 %v1237
    %1280 = vmatprep.subr.bf16.mxu0 0
    %1281 = vmatpush1.bf16.msra.mxu0 %v1238
    %1282 = vmatprep.subr.bf16.mxu0 0
    %1283 = vmatpush1.bf16.msra.mxu0 %v1239
    %1284 = vmatprep.subr.bf16.mxu0 0
    %1285 = vmatpush1.bf16.msra.mxu0 %v1240
    %1286 = vmatprep.subr.bf16.mxu0 0
    %1287 = vmatpush1.bf16.msra.mxu0 %v1241
    %1288 = vmatprep.subr.bf16.mxu0 0
    %1289 = vmatpush1.bf16.msra.mxu0 %v1242
    %1290 = vmatprep.subr.bf16.mxu0 0
    %1291 = vmatpush1.bf16.msra.mxu0 %v1243
    %1292 = vmatprep.mubr.bf16.mxu0 %v1124
    %1293 = vmatmul.mubr.bf16.gmra.mrb[0].mxu0 %v1123
    %v1294 = vpop.f32.mrb[0].mxu0
    %v1295 = vadd.f32 %v1162, %v1294
    %v1296 = vpop.f32.mrb[0].mxu0
    %v1297 = vpop.f32.mrb[0].mxu0
    %v1298 = vpop.f32.mrb[0].mxu0
    %1299 = vdwg.mxu0
    %v1300 = vmax.f32 %v1295, 0.0
    %1301 = vst [vmem:[#allocation12] sm:$0xff] %v1300
    // Predicated region
    $region38: #{tpu_custom_call.1} parent=1 // pred_check
      _
    $region39: #{tpu_custom_call.1} parent=1 // pred_check_branch
      %1303 = sbr.rel (0) target = $region41
    $region40: #{tpu_custom_call.1} parent=1 // pred_region
      %s1305 = ssub.s32 128, 128
      %1306 = vsyncadd [#allocation6], %s1305
      %s1308 = sshll.u32 [#allocation12], 4
      %s1309 = int_to_ptr.vmem [resolvable:$true] %s1308
      %1311 = dma.vmem_to_hbm [thread:$0]  %s1309, 128, %s6, [#allocation6]
    $region41: #{tpu_custom_call.1} parent=1 // pred_fallthru
      _
    // Predicated region
    $region42: #{tpu_custom_call.1} parent=1 // pred_check
      _
    $region43: #{tpu_custom_call.1} parent=1 // pred_check_branch
      %1313 = sbr.rel (0) target = $region45
    $region44: #{tpu_custom_call.1} parent=1 // pred_region
      %1314 = dma.done [#allocation6], 128
    $region45: #{tpu_custom_call.1} parent=1 // pred_fallthru
      _
    %1315 = vsyncpa [#allocation5], 1
    %1316 = vsyncpa [#allocation8], 1
    %1317 = vsyncpa [#allocation11], 1
    %1318 = vsyncpa [#allocation6], 1
  %1319 = vsyncmov [#allocation3]
  %s1320 = vpop.sfrf %1319
  %p1321 = scmp.eq.s32.totalorder %s1320, 0
  %p1322 = pneg %p1321
  %1324 = shalt.err (%p1322)
  %s1325 = scalar_lea.sflag [#allocation3], 1
  %1326 = vsyncmov %s1325
  %s1327 = vpop.sfrf %1326
  %p1328 = scmp.eq.s32.totalorder %s1327, 0
  %p1329 = pneg %p1328
  %1331 = shalt.err (%p1329)

</llo_original>
